<compile_context>
chip_gen: v5e
topology: v5e:2x2
jax: 0.10.0
libtpu: 0.0.40
codegen_flags: <defaults>
</compile_context>

<pallas_src>
import functools
import math

import jax
import jax.numpy as jnp
from jax.experimental import pallas as pl
from jax.experimental.pallas import tpu as pltpu


def _causal_attn_kernel(x_ref, wqT_ref, bq_ref, wkvT_ref, bkv_ref, wpT_ref, bp_ref,
                        out_ref, kv_ref, sa_ref, *, embed_dim, n_heads, q_block):
    f32 = jnp.float32
    bf16 = jnp.bfloat16
    D = embed_dim
    H = n_heads
    Dh = D // H
    HD = H * D
    tq = q_block
    N = x_ref.shape[0]
    qi = pl.program_id(1)

    # --- K/V projection: ONE GEMM per batch element, cached in VMEM across all
    #     query blocks (the q grid axis is "arbitrary" so the scratch carries).
    @pl.when(qi == 0)
    def _():
        xb = x_ref[...].astype(bf16)                                    # (N, D)
        kv = jnp.dot(xb, wkvT_ref[...], preferred_element_type=f32) + bkv_ref[...]
        kv_ref[...] = kv.astype(bf16)                                   # (N, HD + H*Dh)

    # --- Q projection for this query block only (1/sqrt(D) folded into W_q / b_q).
    q_start = pl.multiple_of(qi * tq, tq)
    xq = x_ref[pl.ds(q_start, tq), :].astype(bf16)                      # (tq, D)
    q_all = (jnp.dot(xq, wqT_ref[...], preferred_element_type=f32)
             + bq_ref[...]).astype(bf16)                                # (tq, H*D)

    # --- Additive causal mask, computed once per step and reused by every head.
    row = qi * tq + jax.lax.broadcasted_iota(jnp.int32, (tq, N), 0)
    col = jax.lax.broadcasted_iota(jnp.int32, (tq, N), 1)
    mask_add = jnp.where(col <= row, jnp.float32(0.0), jnp.float32(-1e30))  # (tq, N)

    # --- Per-head attention; PV outputs written in place into the (tq, D) slab.
    for h in range(H):
        q_h = q_all[:, h * D:(h + 1) * D]                               # (tq, D)  bf16
        k_h = kv_ref[:, h * D:(h + 1) * D]                              # (N, D)   bf16
        v_h = kv_ref[:, HD + h * Dh:HD + (h + 1) * Dh]                  # (N, Dh)  bf16

        s = jax.lax.dot_general(q_h, k_h, (((1,), (1,)), ((), ())),
                                preferred_element_type=f32)             # (tq, N)  f32
        s = s + mask_add

        m = jnp.max(s, axis=-1, keepdims=True)
        e = jnp.exp(s - m)
        den = jnp.sum(e, axis=-1, keepdims=True)
        p = (e * pl.reciprocal(den, approx=True)).astype(bf16)          # (tq, N)

        sa_ref[:, h * Dh:(h + 1) * Dh] = jnp.dot(
            p, v_h, preferred_element_type=f32).astype(bf16)

    # --- Output projection: a single (tq, D) @ (D, D) MXU matmul.
    out = jnp.dot(sa_ref[...], wpT_ref[...], preferred_element_type=f32) + bp_ref[...]
    out_ref[...] = out.astype(out_ref.dtype)


def causal_self_attention(x, wkqv, bkqv, wproj, bproj, n_heads, max_context_len,
                          q_block=None):
    """x: (B, N, D);  wkqv: (H, 2D+Dh, D) stacked per-head nn.Linear weights
    (PyTorch (out, in) layout);  bkqv: (H, 2D+Dh);  wproj: (D, D);  bproj: (D,)."""
    B, N, D = x.shape
    H = n_heads
    assert D % H == 0 and N <= max_context_len
    Dh = D // H
    HD = H * D
    KV = HD + H * Dh          # K slab width + V slab width (per-head K/Q width is D)

    # Query tile: 256-class tiles keep the 256-wide MXU fed (v6e). On v7x
    # (64 MiB VMEM/TC) pass q_block=128 if the resident set is tight.
    if q_block is None:
        tq = N if N <= 256 else (256 if N % 256 == 0 else 128)
    else:
        tq = q_block
    assert N % tq == 0
    nq = N // tq

    f32, bf16 = jnp.float32, jnp.bfloat16
    wk = wkqv[:, :D, :]                  # (H, D, D)
    wq = wkqv[:, D:2 * D, :]             # (H, D, D)
    wv = wkqv[:, 2 * D:, :]              # (H, Dh, D)

    # Lane-dense, pre-transposed bf16 weight slabs; column block h holds head h.
    # 1/sqrt(D) folded into W_q / b_q so there is no O(H*tq*N) score scaling.
    scale = 1.0 / math.sqrt(D)
    wqT = (jnp.transpose(wq, (2, 0, 1)).reshape(D, HD) * scale).astype(bf16)
    bq = (bkqv[:, D:2 * D].reshape(1, HD) * scale).astype(bf16)
    wkT = jnp.transpose(wk, (2, 0, 1)).reshape(D, HD)
    wvT = jnp.transpose(wv, (2, 0, 1)).reshape(D, H * Dh)
    wkvT = jnp.concatenate([wkT, wvT], axis=1).astype(bf16)             # (D, KV)
    bkv = jnp.concatenate([bkqv[:, :D].reshape(1, HD),
                           bkqv[:, 2 * D:].reshape(1, H * Dh)], axis=1).astype(bf16)
    wpT = jnp.transpose(wproj).astype(bf16)                             # (D, D)
    bp = bproj.reshape(1, D).astype(bf16)

    # --- VMEM budget: actual block bytes * buffer count + scratch + live f32 set.
    xbytes = x.dtype.itemsize
    weight_bytes = 2 * (D * HD + HD + D * KV + KV + D * D + D)          # bf16, 1 buffer
    resident = (N * D * xbytes                   # x block (single-buffered)
                + 2 * tq * D * xbytes            # output block (double-buffered)
                + weight_bytes
                + 2 * (N * KV + tq * D))         # kv + sa VMEM scratch (bf16)
    working = 4 * (tq * HD + 3 * tq * N + tq * KV + 2 * tq * D)         # live f32 values
    try:
        vmem_cap = pltpu.get_tpu_info().vmem_capacity_bytes
    except Exception:
        vmem_cap = 64 * 2 ** 20
    vmem_limit = int(min(max(2 * (resident + working), 32 * 2 ** 20),
                         int(0.75 * vmem_cap)))

    kernel = functools.partial(_causal_attn_kernel, embed_dim=D, n_heads=H,
                               q_block=tq)

    def _call(single_buffer):
        def const_spec(shape):
            if single_buffer:
                return pl.BlockSpec(shape, lambda b, q: (0, 0),
                                    pipeline_mode=pl.Buffered(1))
            return pl.BlockSpec(shape, lambda b, q: (0, 0))

        if single_buffer:
            x_spec = pl.BlockSpec((pl.Squeezed(), N, D), lambda b, q: (b, 0, 0),
                                  pipeline_mode=pl.Buffered(1))
        else:
            x_spec = pl.BlockSpec((pl.Squeezed(), N, D), lambda b, q: (b, 0, 0))

        return pl.pallas_call(
            kernel,
            out_shape=jax.ShapeDtypeStruct((B, N, D), x.dtype),
            grid_spec=pltpu.PrefetchScalarGridSpec(
                num_scalar_prefetch=0,
                grid=(B, nq),
                in_specs=[
                    x_spec,                 # x: full sequence for this batch element
                    const_spec((D, HD)),    # W_q^T  (pre-scaled, bf16)
                    const_spec((1, HD)),    # b_q    (pre-scaled, bf16)
                    const_spec((D, KV)),    # W_kv^T (bf16)
                    const_spec((1, KV)),    # b_kv   (bf16)
                    const_spec((D, D)),     # W_proj^T (bf16)
                    const_spec((1, D)),     # b_proj (bf16)
                ],
                out_specs=pl.BlockSpec((pl.Squeezed(), tq, D),
                                       lambda b, q: (b, q, 0)),
                scratch_shapes=[
                    pltpu.VMEM((N, KV), bf16),   # cached K/V projection (per batch elem)
                    pltpu.VMEM((tq, D), bf16),   # concat-head PV slab
                ],
            ),
            compiler_params=pltpu.CompilerParams(
                # B is "parallel" (megacore-shardable); the q axis carries the cached
                # K/V scratch across query blocks so it must stay "arbitrary".
                dimension_semantics=("parallel", "arbitrary"),
                vmem_limit_bytes=vmem_limit),
        )(x, wqT, bq, wkvT, bkv, wpT, bp)

    try:
        return _call(True)
    except Exception:
        # pipeline_mode=pl.Buffered(1) not supported by this JAX version; fall back
        # to default double-buffering of the grid-invariant slabs.
        return _call(False)


def _reference(x, wkqv, bkqv, wproj, bproj, n_heads):
    """Pure-JAX f32 reference mirroring the PyTorch forward."""
    B, N, D = x.shape
    y = jnp.einsum('bnd,hed->bhne', x, wkqv) + bkqv[None, :, None, :]
    k, q, v = y[..., :D], y[..., D:2 * D], y[..., 2 * D:]
    A = jnp.einsum('bhnd,bhmd->bhnm', q, k) / math.sqrt(D)
    mask = jnp.tril(jnp.ones((N, N), jnp.float32))
    A = jnp.where(mask[None, None] == 0.0, -jnp.inf, A)
    A = jax.nn.softmax(A, axis=-1)
    sa = jnp.einsum('bhnm,bhmd->bhnd', A, v)
    sa = jnp.transpose(sa, (0, 2, 1, 3)).reshape(B, N, D)
    return sa @ wproj.T + bproj


if __name__ == "__main__":
    embed_dim = 32
    n_heads = 4
    head_dim = embed_dim // n_heads
    max_context_len = 16
    B, N = 2, 8
    E = 2 * embed_dim + head_dim

    key = jax.random.PRNGKey(0)
    kx, kw, kb, kpw, kpb = jax.random.split(key, 5)

    # deterministic nn.Linear-style init: uniform(-1/sqrt(fan_in), 1/sqrt(fan_in))
    bound = 1.0 / math.sqrt(embed_dim)
    wkqv = jax.random.uniform(kw, (n_heads, E, embed_dim), jnp.float32, -bound, bound)
    bkqv = jax.random.uniform(kb, (n_heads, E), jnp.float32, -bound, bound)
    wproj = jax.random.uniform(kpw, (embed_dim, embed_dim), jnp.float32, -bound, bound)
    bproj = jax.random.uniform(kpb, (embed_dim,), jnp.float32, -bound, bound)

    x = jax.random.normal(kx, (B, N, embed_dim), jnp.float32)

    out = causal_self_attention(x, wkqv, bkqv, wproj, bproj, n_heads, max_context_len)
    out = jax.block_until_ready(out)

    ref = _reference(x, wkqv, bkqv, wproj, bproj, n_heads)
    assert out.shape == (B, N, embed_dim)
    # bf16 MXU operands -> compare at a bf16-appropriate tolerance.
    max_err = float(jnp.max(jnp.abs(out - ref)))
    assert jnp.allclose(out, ref, rtol=2e-2, atol=2e-2), max_err

    print("KERNEL_OK")
</pallas_src>

<mosaic_0001>
module attributes {stable_mosaic.version = 11 : i64} {
  func.func @_causal_attn_kernel(%arg0: i32, %arg1: i32, %arg2: memref<1x8x32xf32, #tpu.memory_space<vmem>>, %arg3: memref<32x128xbf16, #tpu.memory_space<vmem>>, %arg4: memref<1x128xbf16, #tpu.memory_space<vmem>>, %arg5: memref<32x160xbf16, #tpu.memory_space<vmem>>, %arg6: memref<1x160xbf16, #tpu.memory_space<vmem>>, %arg7: memref<32x32xbf16, #tpu.memory_space<vmem>>, %arg8: memref<1x32xbf16, #tpu.memory_space<vmem>>, %arg9: memref<1x8x32xf32, #tpu.memory_space<vmem>>, %arg10: memref<8x160xbf16, #tpu.memory_space<vmem>>, %arg11: memref<8x32xbf16, #tpu.memory_space<vmem>>) attributes {dimension_semantics = [#tpu.dimension_semantics<parallel>, #tpu.dimension_semantics<arbitrary>], iteration_bounds = array<i64: 2, 1>, scalar_prefetch = 0 : i64, scratch_operands = 2 : i64, tpu.core_type = #tpu.core_type<tc>, window_params = [{pipeline_mode = #tpu.pipeline_mode<synchronous>, transform_indices = @transform_0, window_bounds = array<i64: 1, 8, 32>}, {pipeline_mode = #tpu.pipeline_mode<synchronous>, transform_indices = @transform_1, window_bounds = array<i64: 32, 128>}, {pipeline_mode = #tpu.pipeline_mode<synchronous>, transform_indices = @transform_2, window_bounds = array<i64: 1, 128>}, {pipeline_mode = #tpu.pipeline_mode<synchronous>, transform_indices = @transform_3, window_bounds = array<i64: 32, 160>}, {pipeline_mode = #tpu.pipeline_mode<synchronous>, transform_indices = @transform_4, window_bounds = array<i64: 1, 160>}, {pipeline_mode = #tpu.pipeline_mode<synchronous>, transform_indices = @transform_5, window_bounds = array<i64: 32, 32>}, {pipeline_mode = #tpu.pipeline_mode<synchronous>, transform_indices = @transform_6, window_bounds = array<i64: 1, 32>}, {transform_indices = @transform_7, window_bounds = array<i64: 1, 8, 32>}]} {
    %c0_i32 = arith.constant 0 : i32
    %0 = arith.cmpi eq, %arg1, %c0_i32 : i32
    %1 = arith.extui %0 : i1 to i32
    %c0_i32_0 = arith.constant 0 : i32
    %2 = arith.cmpi ne, %1, %c0_i32_0 : i32
    scf.if %2 {
      %c0_49 = arith.constant 0 : index
      %c0_50 = arith.constant 0 : index
      %c0_51 = arith.constant 0 : index
      %111 = vector.load %arg2[%c0_49, %c0_50, %c0_51] : memref<1x8x32xf32, #tpu.memory_space<vmem>>, vector<1x8x32xf32>
      %112 = vector.shape_cast %111 : vector<1x8x32xf32> to vector<8x32xf32>
      %113 = arith.truncf %112 : vector<8x32xf32> to vector<8x32xbf16>
      %c0_52 = arith.constant 0 : index
      %c0_53 = arith.constant 0 : index
      %114 = vector.load %arg5[%c0_52, %c0_53] : memref<32x160xbf16, #tpu.memory_space<vmem>>, vector<32x160xbf16>
      %cst_54 = arith.constant dense<0.000000e+00> : vector<8x160xf32>
      %115 = tpu.matmul %113, %114, %cst_54 {dimension_numbers = #tpu.dot_dimension_numbers<[1], [0], [0], [1], [0, 0, 1, 1], [], []>} : vector<8x32xbf16>, vector<32x160xbf16>, vector<8x160xf32> -> vector<8x160xf32>
      %c0_55 = arith.constant 0 : index
      %c0_56 = arith.constant 0 : index
      %116 = vector.load %arg6[%c0_55, %c0_56] : memref<1x160xbf16, #tpu.memory_space<vmem>>, vector<1x160xbf16>
      %117 = arith.extf %116 : vector<1x160xbf16> to vector<1x160xf32>
      %118 = vector.broadcast %117 : vector<1x160xf32> to vector<8x160xf32>
      %119 = arith.addf %115, %118 : vector<8x160xf32>
      %120 = arith.truncf %119 : vector<8x160xf32> to vector<8x160xbf16>
      %c0_57 = arith.constant 0 : index
      %c0_58 = arith.constant 0 : index
      %121 = vector.load %arg10[%c0_57, %c0_58] : memref<8x160xbf16, #tpu.memory_space<vmem>>, vector<8x160xbf16>
      tpu.vector_store %arg10[%c0_57, %c0_58], %120 {strides = array<i32>} : memref<8x160xbf16, #tpu.memory_space<vmem>>, vector<8x160xbf16>,
    } else {
    }
    %c8_i32 = arith.constant 8 : i32
    %3 = arith.muli %arg1, %c8_i32 : i32
    %4 = tpu.assume_multiple %3, 8 : i32
    %c0 = arith.constant 0 : index
    %5 = arith.index_cast %4 : i32 to index
    %c0_1 = arith.constant 0 : index
    %6 = vector.load %arg2[%c0, %5, %c0_1] : memref<1x8x32xf32, #tpu.memory_space<vmem>>, vector<1x8x32xf32>
    %7 = vector.shape_cast %6 : vector<1x8x32xf32> to vector<8x32xf32>
    %8 = arith.truncf %7 : vector<8x32xf32> to vector<8x32xbf16>
    %c0_2 = arith.constant 0 : index
    %c0_3 = arith.constant 0 : index
    %9 = vector.load %arg3[%c0_2, %c0_3] : memref<32x128xbf16, #tpu.memory_space<vmem>>, vector<32x128xbf16>
    %cst = arith.constant dense<0.000000e+00> : vector<8x128xf32>
    %10 = tpu.matmul %8, %9, %cst {dimension_numbers = #tpu.dot_dimension_numbers<[1], [0], [0], [1], [0, 0, 1, 1], [], []>} : vector<8x32xbf16>, vector<32x128xbf16>, vector<8x128xf32> -> vector<8x128xf32>
    %c0_4 = arith.constant 0 : index
    %c0_5 = arith.constant 0 : index
    %11 = vector.load %arg4[%c0_4, %c0_5] : memref<1x128xbf16, #tpu.memory_space<vmem>>, vector<1x128xbf16>
    %12 = arith.extf %11 : vector<1x128xbf16> to vector<1x128xf32>
    %13 = vector.broadcast %12 : vector<1x128xf32> to vector<8x128xf32>
    %14 = arith.addf %10, %13 : vector<8x128xf32>
    %15 = arith.truncf %14 : vector<8x128xf32> to vector<8x128xbf16>
    %c8_i32_6 = arith.constant 8 : i32
    %16 = arith.muli %arg1, %c8_i32_6 : i32
    %17 = tpu.iota {dimensions = array<i32: 0>} : vector<8x8xi32>
    %18 = vector.broadcast %16 : i32 to vector<8x8xi32>
    %19 = arith.addi %18, %17 : vector<8x8xi32>
    %20 = tpu.iota {dimensions = array<i32: 1>} : vector<8x8xi32>
    %21 = arith.cmpi sle, %20, %19 : vector<8x8xi32>
    %cst_7 = arith.constant 0.000000e+00 : f32
    %cst_8 = arith.constant -1.000000e+30 : f32
    %22 = vector.broadcast %cst_7 : f32 to vector<8x8xf32>
    %23 = vector.broadcast %cst_8 : f32 to vector<8x8xf32>
    %24 = arith.select %21, %22, %23 : vector<8x8xi1>, vector<8x8xf32>
    %25 = vector.extract_strided_slice %15 {offsets = [0, 0], sizes = [8, 32], strides = [1, 1]} : vector<8x128xbf16> to vector<8x32xbf16>
    %c0_9 = arith.constant 0 : index
    %c0_10 = arith.constant 0 : index
    %26 = vector.load %arg10[%c0_9, %c0_10] : memref<8x160xbf16, #tpu.memory_space<vmem>>, vector<8x32xbf16>
    %c0_11 = arith.constant 0 : index
    %c128 = arith.constant 128 : index
    %27 = vector.load %arg10[%c0_11, %c128] : memref<8x160xbf16, #tpu.memory_space<vmem>>, vector<8x8xbf16>
    %cst_12 = arith.constant dense<0.000000e+00> : vector<8x8xf32>
    %28 = tpu.matmul %25, %26, %cst_12 {dimension_numbers = #tpu.dot_dimension_numbers<[1], [1], [0], [0], [0, 0, 1, 0], [], []>} : vector<8x32xbf16>, vector<8x32xbf16>, vector<8x8xf32> -> vector<8x8xf32>
    %29 = arith.addf %28, %24 : vector<8x8xf32>
    %cst_13 = arith.constant dense<0xFF800000> : vector<8xf32>
    %30 = vector.multi_reduction <maximumf>, %29, %cst_13 [1] : vector<8x8xf32> to vector<8xf32>
    %31 = vector.shape_cast %30 : vector<8xf32> to vector<8x1xf32>
    %32 = vector.broadcast %31 : vector<8x1xf32> to vector<8x8xf32>
    %33 = arith.subf %29, %32 : vector<8x8xf32>
    %34 = math.exp %33 : vector<8x8xf32>
    %cst_14 = arith.constant dense<0.000000e+00> : vector<8xf32>
    %35 = vector.multi_reduction <add>, %34, %cst_14 [1] : vector<8x8xf32> to vector<8xf32>
    %36 = vector.shape_cast %35 : vector<8xf32> to vector<8x1xf32>
    %37 = tpu.reciprocal %36 {approx = true} : vector<8x1xf32> -> vector<8x1xf32>
    %38 = vector.broadcast %37 : vector<8x1xf32> to vector<8x8xf32>
    %39 = arith.mulf %34, %38 : vector<8x8xf32>
    %40 = arith.truncf %39 : vector<8x8xf32> to vector<8x8xbf16>
    %cst_15 = arith.constant dense<0.000000e+00> : vector<8x8xf32>
    %41 = tpu.matmul %40, %27, %cst_15 {dimension_numbers = #tpu.dot_dimension_numbers<[1], [0], [0], [1], [0, 0, 1, 1], [], []>} : vector<8x8xbf16>, vector<8x8xbf16>, vector<8x8xf32> -> vector<8x8xf32>
    %42 = arith.truncf %41 : vector<8x8xf32> to vector<8x8xbf16>
    %c0_16 = arith.constant 0 : index
    %c0_17 = arith.constant 0 : index
    %43 = vector.load %arg11[%c0_16, %c0_17] : memref<8x32xbf16, #tpu.memory_space<vmem>>, vector<8x8xbf16>
    tpu.vector_store %arg11[%c0_16, %c0_17], %42 {strides = array<i32>} : memref<8x32xbf16, #tpu.memory_space<vmem>>, vector<8x8xbf16>,
    %44 = vector.extract_strided_slice %15 {offsets = [0, 32], sizes = [8, 32], strides = [1, 1]} : vector<8x128xbf16> to vector<8x32xbf16>
    %c0_18 = arith.constant 0 : index
    %c32 = arith.constant 32 : index
    %45 = vector.load %arg10[%c0_18, %c32] : memref<8x160xbf16, #tpu.memory_space<vmem>>, vector<8x32xbf16>
    %c0_19 = arith.constant 0 : index
    %c136 = arith.constant 136 : index
    %46 = vector.load %arg10[%c0_19, %c136] : memref<8x160xbf16, #tpu.memory_space<vmem>>, vector<8x8xbf16>
    %cst_20 = arith.constant dense<0.000000e+00> : vector<8x8xf32>
    %47 = tpu.matmul %44, %45, %cst_20 {dimension_numbers = #tpu.dot_dimension_numbers<[1], [1], [0], [0], [0, 0, 1, 0], [], []>} : vector<8x32xbf16>, vector<8x32xbf16>, vector<8x8xf32> -> vector<8x8xf32>
    %48 = arith.addf %47, %24 : vector<8x8xf32>
    %cst_21 = arith.constant dense<0xFF800000> : vector<8xf32>
    %49 = vector.multi_reduction <maximumf>, %48, %cst_21 [1] : vector<8x8xf32> to vector<8xf32>
    %50 = vector.shape_cast %49 : vector<8xf32> to vector<8x1xf32>
    %51 = vector.broadcast %50 : vector<8x1xf32> to vector<8x8xf32>
    %52 = arith.subf %48, %51 : vector<8x8xf32>
    %53 = math.exp %52 : vector<8x8xf32>
    %cst_22 = arith.constant dense<0.000000e+00> : vector<8xf32>
    %54 = vector.multi_reduction <add>, %53, %cst_22 [1] : vector<8x8xf32> to vector<8xf32>
    %55 = vector.shape_cast %54 : vector<8xf32> to vector<8x1xf32>
    %56 = tpu.reciprocal %55 {approx = true} : vector<8x1xf32> -> vector<8x1xf32>
    %57 = vector.broadcast %56 : vector<8x1xf32> to vector<8x8xf32>
    %58 = arith.mulf %53, %57 : vector<8x8xf32>
    %59 = arith.truncf %58 : vector<8x8xf32> to vector<8x8xbf16>
    %cst_23 = arith.constant dense<0.000000e+00> : vector<8x8xf32>
    %60 = tpu.matmul %59, %46, %cst_23 {dimension_numbers = #tpu.dot_dimension_numbers<[1], [0], [0], [1], [0, 0, 1, 1], [], []>} : vector<8x8xbf16>, vector<8x8xbf16>, vector<8x8xf32> -> vector<8x8xf32>
    %61 = arith.truncf %60 : vector<8x8xf32> to vector<8x8xbf16>
    %c0_24 = arith.constant 0 : index
    %c8 = arith.constant 8 : index
    %62 = vector.load %arg11[%c0_24, %c8] : memref<8x32xbf16, #tpu.memory_space<vmem>>, vector<8x8xbf16>
    tpu.vector_store %arg11[%c0_24, %c8], %61 {strides = array<i32>} : memref<8x32xbf16, #tpu.memory_space<vmem>>, vector<8x8xbf16>,
    %63 = vector.extract_strided_slice %15 {offsets = [0, 64], sizes = [8, 32], strides = [1, 1]} : vector<8x128xbf16> to vector<8x32xbf16>
    %c0_25 = arith.constant 0 : index
    %c64 = arith.constant 64 : index
    %64 = vector.load %arg10[%c0_25, %c64] : memref<8x160xbf16, #tpu.memory_space<vmem>>, vector<8x32xbf16>
    %c0_26 = arith.constant 0 : index
    %c144 = arith.constant 144 : index
    %65 = vector.load %arg10[%c0_26, %c144] : memref<8x160xbf16, #tpu.memory_space<vmem>>, vector<8x8xbf16>
    %cst_27 = arith.constant dense<0.000000e+00> : vector<8x8xf32>
    %66 = tpu.matmul %63, %64, %cst_27 {dimension_numbers = #tpu.dot_dimension_numbers<[1], [1], [0], [0], [0, 0, 1, 0], [], []>} : vector<8x32xbf16>, vector<8x32xbf16>, vector<8x8xf32> -> vector<8x8xf32>
    %67 = arith.addf %66, %24 : vector<8x8xf32>
    %cst_28 = arith.constant dense<0xFF800000> : vector<8xf32>
    %68 = vector.multi_reduction <maximumf>, %67, %cst_28 [1] : vector<8x8xf32> to vector<8xf32>
    %69 = vector.shape_cast %68 : vector<8xf32> to vector<8x1xf32>
    %70 = vector.broadcast %69 : vector<8x1xf32> to vector<8x8xf32>
    %71 = arith.subf %67, %70 : vector<8x8xf32>
    %72 = math.exp %71 : vector<8x8xf32>
    %cst_29 = arith.constant dense<0.000000e+00> : vector<8xf32>
    %73 = vector.multi_reduction <add>, %72, %cst_29 [1] : vector<8x8xf32> to vector<8xf32>
    %74 = vector.shape_cast %73 : vector<8xf32> to vector<8x1xf32>
    %75 = tpu.reciprocal %74 {approx = true} : vector<8x1xf32> -> vector<8x1xf32>
    %76 = vector.broadcast %75 : vector<8x1xf32> to vector<8x8xf32>
    %77 = arith.mulf %72, %76 : vector<8x8xf32>
    %78 = arith.truncf %77 : vector<8x8xf32> to vector<8x8xbf16>
    %cst_30 = arith.constant dense<0.000000e+00> : vector<8x8xf32>
    %79 = tpu.matmul %78, %65, %cst_30 {dimension_numbers = #tpu.dot_dimension_numbers<[1], [0], [0], [1], [0, 0, 1, 1], [], []>} : vector<8x8xbf16>, vector<8x8xbf16>, vector<8x8xf32> -> vector<8x8xf32>
    %80 = arith.truncf %79 : vector<8x8xf32> to vector<8x8xbf16>
    %c0_31 = arith.constant 0 : index
    %c16 = arith.constant 16 : index
    %81 = vector.load %arg11[%c0_31, %c16] : memref<8x32xbf16, #tpu.memory_space<vmem>>, vector<8x8xbf16>
    tpu.vector_store %arg11[%c0_31, %c16], %80 {strides = array<i32>} : memref<8x32xbf16, #tpu.memory_space<vmem>>, vector<8x8xbf16>,
    %82 = vector.extract_strided_slice %15 {offsets = [0, 96], sizes = [8, 32], strides = [1, 1]} : vector<8x128xbf16> to vector<8x32xbf16>
    %c0_32 = arith.constant 0 : index
    %c96 = arith.constant 96 : index
    %83 = vector.load %arg10[%c0_32, %c96] : memref<8x160xbf16, #tpu.memory_space<vmem>>, vector<8x32xbf16>
    %c0_33 = arith.constant 0 : index
    %c152 = arith.constant 152 : index
    %84 = vector.load %arg10[%c0_33, %c152] : memref<8x160xbf16, #tpu.memory_space<vmem>>, vector<8x8xbf16>
    %cst_34 = arith.constant dense<0.000000e+00> : vector<8x8xf32>
    %85 = tpu.matmul %82, %83, %cst_34 {dimension_numbers = #tpu.dot_dimension_numbers<[1], [1], [0], [0], [0, 0, 1, 0], [], []>} : vector<8x32xbf16>, vector<8x32xbf16>, vector<8x8xf32> -> vector<8x8xf32>
    %86 = arith.addf %85, %24 : vector<8x8xf32>
    %cst_35 = arith.constant dense<0xFF800000> : vector<8xf32>
    %87 = vector.multi_reduction <maximumf>, %86, %cst_35 [1] : vector<8x8xf32> to vector<8xf32>
    %88 = vector.shape_cast %87 : vector<8xf32> to vector<8x1xf32>
    %89 = vector.broadcast %88 : vector<8x1xf32> to vector<8x8xf32>
    %90 = arith.subf %86, %89 : vector<8x8xf32>
    %91 = math.exp %90 : vector<8x8xf32>
    %cst_36 = arith.constant dense<0.000000e+00> : vector<8xf32>
    %92 = vector.multi_reduction <add>, %91, %cst_36 [1] : vector<8x8xf32> to vector<8xf32>
    %93 = vector.shape_cast %92 : vector<8xf32> to vector<8x1xf32>
    %94 = tpu.reciprocal %93 {approx = true} : vector<8x1xf32> -> vector<8x1xf32>
    %95 = vector.broadcast %94 : vector<8x1xf32> to vector<8x8xf32>
    %96 = arith.mulf %91, %95 : vector<8x8xf32>
    %97 = arith.truncf %96 : vector<8x8xf32> to vector<8x8xbf16>
    %cst_37 = arith.constant dense<0.000000e+00> : vector<8x8xf32>
    %98 = tpu.matmul %97, %84, %cst_37 {dimension_numbers = #tpu.dot_dimension_numbers<[1], [0], [0], [1], [0, 0, 1, 1], [], []>} : vector<8x8xbf16>, vector<8x8xbf16>, vector<8x8xf32> -> vector<8x8xf32>
    %99 = arith.truncf %98 : vector<8x8xf32> to vector<8x8xbf16>
    %c0_38 = arith.constant 0 : index
    %c24 = arith.constant 24 : index
    %100 = vector.load %arg11[%c0_38, %c24] : memref<8x32xbf16, #tpu.memory_space<vmem>>, vector<8x8xbf16>
    tpu.vector_store %arg11[%c0_38, %c24], %99 {strides = array<i32>} : memref<8x32xbf16, #tpu.memory_space<vmem>>, vector<8x8xbf16>,
    %c0_39 = arith.constant 0 : index
    %c0_40 = arith.constant 0 : index
    %101 = vector.load %arg11[%c0_39, %c0_40] : memref<8x32xbf16, #tpu.memory_space<vmem>>, vector<8x32xbf16>
    %c0_41 = arith.constant 0 : index
    %c0_42 = arith.constant 0 : index
    %102 = vector.load %arg7[%c0_41, %c0_42] : memref<32x32xbf16, #tpu.memory_space<vmem>>, vector<32x32xbf16>
    %cst_43 = arith.constant dense<0.000000e+00> : vector<8x32xf32>
    %103 = tpu.matmul %101, %102, %cst_43 {dimension_numbers = #tpu.dot_dimension_numbers<[1], [0], [0], [1], [0, 0, 1, 1], [], []>} : vector<8x32xbf16>, vector<32x32xbf16>, vector<8x32xf32> -> vector<8x32xf32>
    %c0_44 = arith.constant 0 : index
    %c0_45 = arith.constant 0 : index
    %104 = vector.load %arg8[%c0_44, %c0_45] : memref<1x32xbf16, #tpu.memory_space<vmem>>, vector<1x32xbf16>
    %105 = arith.extf %104 : vector<1x32xbf16> to vector<1x32xf32>
    %106 = vector.broadcast %105 : vector<1x32xf32> to vector<8x32xf32>
    %107 = arith.addf %103, %106 : vector<8x32xf32>
    %c0_46 = arith.constant 0 : index
    %c0_47 = arith.constant 0 : index
    %c0_48 = arith.constant 0 : index
    %108 = vector.load %arg9[%c0_46, %c0_47, %c0_48] : memref<1x8x32xf32, #tpu.memory_space<vmem>>, vector<1x8x32xf32>
    %109 = vector.shape_cast %108 : vector<1x8x32xf32> to vector<8x32xf32>
    %110 = vector.shape_cast %107 : vector<8x32xf32> to vector<1x8x32xf32>
    tpu.vector_store %arg9[%c0_46, %c0_47, %c0_48], %110 {strides = array<i32>} : memref<1x8x32xf32, #tpu.memory_space<vmem>>, vector<1x8x32xf32>,
    return
  }
  func.func @transform_0(%arg0: i32, %arg1: i32) -> (i32, i32, i32) {
    %c0_i32 = arith.constant 0 : i32
    %c0_i32_0 = arith.constant 0 : i32
    %c0_i32_1 = arith.constant 0 : i32
    return %arg0, %c0_i32, %c0_i32_0 : i32, i32, i32
  }
  func.func @transform_1(%arg0: i32, %arg1: i32) -> (i32, i32) {
    %c0_i32 = arith.constant 0 : i32
    %c0_i32_0 = arith.constant 0 : i32
    %c0_i32_1 = arith.constant 0 : i32
    return %c0_i32, %c0_i32_0 : i32, i32
  }
  func.func @transform_2(%arg0: i32, %arg1: i32) -> (i32, i32) {
    %c0_i32 = arith.constant 0 : i32
    %c0_i32_0 = arith.constant 0 : i32
    %c0_i32_1 = arith.constant 0 : i32
    return %c0_i32, %c0_i32_0 : i32, i32
  }
  func.func @transform_3(%arg0: i32, %arg1: i32) -> (i32, i32) {
    %c0_i32 = arith.constant 0 : i32
    %c0_i32_0 = arith.constant 0 : i32
    %c0_i32_1 = arith.constant 0 : i32
    return %c0_i32, %c0_i32_0 : i32, i32
  }
  func.func @transform_4(%arg0: i32, %arg1: i32) -> (i32, i32) {
    %c0_i32 = arith.constant 0 : i32
    %c0_i32_0 = arith.constant 0 : i32
    %c0_i32_1 = arith.constant 0 : i32
    return %c0_i32, %c0_i32_0 : i32, i32
  }
  func.func @transform_5(%arg0: i32, %arg1: i32) -> (i32, i32) {
    %c0_i32 = arith.constant 0 : i32
    %c0_i32_0 = arith.constant 0 : i32
    %c0_i32_1 = arith.constant 0 : i32
    return %c0_i32, %c0_i32_0 : i32, i32
  }
  func.func @transform_6(%arg0: i32, %arg1: i32) -> (i32, i32) {
    %c0_i32 = arith.constant 0 : i32
    %c0_i32_0 = arith.constant 0 : i32
    %c0_i32_1 = arith.constant 0 : i32
    return %c0_i32, %c0_i32_0 : i32, i32
  }
  func.func @transform_7(%arg0: i32, %arg1: i32) -> (i32, i32, i32) {
    %c0_i32 = arith.constant 0 : i32
    %c0_i32_0 = arith.constant 0 : i32
    return %arg0, %arg1, %c0_i32 : i32, i32, i32
  }
}

module attributes {stable_mosaic.version = 11 : i64} {
  func.func @_causal_attn_kernel(%arg0: i32, %arg1: i32, %arg2: memref<1x8x32xf32, #tpu.memory_space<vmem>>, %arg3: memref<32x128xbf16, #tpu.memory_space<vmem>>, %arg4: memref<1x128xbf16, #tpu.memory_space<vmem>>, %arg5: memref<32x160xbf16, #tpu.memory_space<vmem>>, %arg6: memref<1x160xbf16, #tpu.memory_space<vmem>>, %arg7: memref<32x32xbf16, #tpu.memory_space<vmem>>, %arg8: memref<1x32xbf16, #tpu.memory_space<vmem>>, %arg9: memref<1x8x32xf32, #tpu.memory_space<vmem>>, %arg10: memref<8x160xbf16, #tpu.memory_space<vmem>>, %arg11: memref<8x32xbf16, #tpu.memory_space<vmem>>) attributes {dimension_semantics = [#tpu.dimension_semantics<parallel>, #tpu.dimension_semantics<arbitrary>], iteration_bounds = array<i64: 2, 1>, scalar_prefetch = 0 : i64, scratch_operands = 2 : i64, tpu.core_type = #tpu.core_type<tc>, window_params = [{transform_indices = @transform_0, window_bounds = array<i64: 1, 8, 32>}, {pipeline_mode = #tpu.pipeline_mode<synchronous>, transform_indices = @transform_1, window_bounds = array<i64: 32, 128>}, {pipeline_mode = #tpu.pipeline_mode<synchronous>, transform_indices = @transform_2, window_bounds = array<i64: 1, 128>}, {pipeline_mode = #tpu.pipeline_mode<synchronous>, transform_indices = @transform_3, window_bounds = array<i64: 32, 160>}, {pipeline_mode = #tpu.pipeline_mode<synchronous>, transform_indices = @transform_4, window_bounds = array<i64: 1, 160>}, {pipeline_mode = #tpu.pipeline_mode<synchronous>, transform_indices = @transform_5, window_bounds = array<i64: 32, 32>}, {pipeline_mode = #tpu.pipeline_mode<synchronous>, transform_indices = @transform_6, window_bounds = array<i64: 1, 32>}, {transform_indices = @transform_7, window_bounds = array<i64: 1, 8, 32>}]} {
    %c0_i32 = arith.constant 0 : i32
    %0 = arith.cmpi eq, %arg1, %c0_i32 : i32
    %1 = arith.extui %0 : i1 to i32
    %c0_i32_0 = arith.constant 0 : i32
    %2 = arith.cmpi ne, %1, %c0_i32_0 : i32
    scf.if %2 {
      %c0_49 = arith.constant 0 : index
      %c0_50 = arith.constant 0 : index
      %c0_51 = arith.constant 0 : index
      %111 = vector.load %arg2[%c0_49, %c0_50, %c0_51] : memref<1x8x32xf32, #tpu.memory_space<vmem>>, vector<1x8x32xf32>
      %112 = vector.shape_cast %111 : vector<1x8x32xf32> to vector<8x32xf32>
      %113 = arith.truncf %112 : vector<8x32xf32> to vector<8x32xbf16>
      %c0_52 = arith.constant 0 : index
      %c0_53 = arith.constant 0 : index
      %114 = vector.load %arg5[%c0_52, %c0_53] : memref<32x160xbf16, #tpu.memory_space<vmem>>, vector<32x160xbf16>
      %cst_54 = arith.constant dense<0.000000e+00> : vector<8x160xf32>
      %115 = tpu.matmul %113, %114, %cst_54 {dimension_numbers = #tpu.dot_dimension_numbers<[1], [0], [0], [1], [0, 0, 1, 1], [], []>} : vector<8x32xbf16>, vector<32x160xbf16>, vector<8x160xf32> -> vector<8x160xf32>
      %c0_55 = arith.constant 0 : index
      %c0_56 = arith.constant 0 : index
      %116 = vector.load %arg6[%c0_55, %c0_56] : memref<1x160xbf16, #tpu.memory_space<vmem>>, vector<1x160xbf16>
      %117 = arith.extf %116 : vector<1x160xbf16> to vector<1x160xf32>
      %118 = vector.broadcast %117 : vector<1x160xf32> to vector<8x160xf32>
      %119 = arith.addf %115, %118 : vector<8x160xf32>
      %120 = arith.truncf %119 : vector<8x160xf32> to vector<8x160xbf16>
      %c0_57 = arith.constant 0 : index
      %c0_58 = arith.constant 0 : index
      %121 = vector.load %arg10[%c0_57, %c0_58] : memref<8x160xbf16, #tpu.memory_space<vmem>>, vector<8x160xbf16>
      tpu.vector_store %arg10[%c0_57, %c0_58], %120 {strides = array<i32>} : memref<8x160xbf16, #tpu.memory_space<vmem>>, vector<8x160xbf16>,
    } else {
    }
    %c8_i32 = arith.constant 8 : i32
    %3 = arith.muli %arg1, %c8_i32 : i32
    %4 = tpu.assume_multiple %3, 8 : i32
    %c0 = arith.constant 0 : index
    %5 = arith.index_cast %4 : i32 to index
    %c0_1 = arith.constant 0 : index
    %6 = vector.load %arg2[%c0, %5, %c0_1] : memref<1x8x32xf32, #tpu.memory_space<vmem>>, vector<1x8x32xf32>
    %7 = vector.shape_cast %6 : vector<1x8x32xf32> to vector<8x32xf32>
    %8 = arith.truncf %7 : vector<8x32xf32> to vector<8x32xbf16>
    %c0_2 = arith.constant 0 : index
    %c0_3 = arith.constant 0 : index
    %9 = vector.load %arg3[%c0_2, %c0_3] : memref<32x128xbf16, #tpu.memory_space<vmem>>, vector<32x128xbf16>
    %cst = arith.constant dense<0.000000e+00> : vector<8x128xf32>
    %10 = tpu.matmul %8, %9, %cst {dimension_numbers = #tpu.dot_dimension_numbers<[1], [0], [0], [1], [0, 0, 1, 1], [], []>} : vector<8x32xbf16>, vector<32x128xbf16>, vector<8x128xf32> -> vector<8x128xf32>
    %c0_4 = arith.constant 0 : index
    %c0_5 = arith.constant 0 : index
    %11 = vector.load %arg4[%c0_4, %c0_5] : memref<1x128xbf16, #tpu.memory_space<vmem>>, vector<1x128xbf16>
    %12 = arith.extf %11 : vector<1x128xbf16> to vector<1x128xf32>
    %13 = vector.broadcast %12 : vector<1x128xf32> to vector<8x128xf32>
    %14 = arith.addf %10, %13 : vector<8x128xf32>
    %15 = arith.truncf %14 : vector<8x128xf32> to vector<8x128xbf16>
    %c8_i32_6 = arith.constant 8 : i32
    %16 = arith.muli %arg1, %c8_i32_6 : i32
    %17 = tpu.iota {dimensions = array<i32: 0>} : vector<8x8xi32>
    %18 = vector.broadcast %16 : i32 to vector<8x8xi32>
    %19 = arith.addi %18, %17 : vector<8x8xi32>
    %20 = tpu.iota {dimensions = array<i32: 1>} : vector<8x8xi32>
    %21 = arith.cmpi sle, %20, %19 : vector<8x8xi32>
    %cst_7 = arith.constant 0.000000e+00 : f32
    %cst_8 = arith.constant -1.000000e+30 : f32
    %22 = vector.broadcast %cst_7 : f32 to vector<8x8xf32>
    %23 = vector.broadcast %cst_8 : f32 to vector<8x8xf32>
    %24 = arith.select %21, %22, %23 : vector<8x8xi1>, vector<8x8xf32>
    %25 = vector.extract_strided_slice %15 {offsets = [0, 0], sizes = [8, 32], strides = [1, 1]} : vector<8x128xbf16> to vector<8x32xbf16>
    %c0_9 = arith.constant 0 : index
    %c0_10 = arith.constant 0 : index
    %26 = vector.load %arg10[%c0_9, %c0_10] : memref<8x160xbf16, #tpu.memory_space<vmem>>, vector<8x32xbf16>
    %c0_11 = arith.constant 0 : index
    %c128 = arith.constant 128 : index
    %27 = vector.load %arg10[%c0_11, %c128] : memref<8x160xbf16, #tpu.memory_space<vmem>>, vector<8x8xbf16>
    %cst_12 = arith.constant dense<0.000000e+00> : vector<8x8xf32>
    %28 = tpu.matmul %25, %26, %cst_12 {dimension_numbers = #tpu.dot_dimension_numbers<[1], [1], [0], [0], [0, 0, 1, 0], [], []>} : vector<8x32xbf16>, vector<8x32xbf16>, vector<8x8xf32> -> vector<8x8xf32>
    %29 = arith.addf %28, %24 : vector<8x8xf32>
    %cst_13 = arith.constant dense<0xFF800000> : vector<8xf32>
    %30 = vector.multi_reduction <maximumf>, %29, %cst_13 [1] : vector<8x8xf32> to vector<8xf32>
    %31 = vector.shape_cast %30 : vector<8xf32> to vector<8x1xf32>
    %32 = vector.broadcast %31 : vector<8x1xf32> to vector<8x8xf32>
    %33 = arith.subf %29, %32 : vector<8x8xf32>
    %34 = math.exp %33 : vector<8x8xf32>
    %cst_14 = arith.constant dense<0.000000e+00> : vector<8xf32>
    %35 = vector.multi_reduction <add>, %34, %cst_14 [1] : vector<8x8xf32> to vector<8xf32>
    %36 = vector.shape_cast %35 : vector<8xf32> to vector<8x1xf32>
    %37 = tpu.reciprocal %36 {approx = true} : vector<8x1xf32> -> vector<8x1xf32>
    %38 = vector.broadcast %37 : vector<8x1xf32> to vector<8x8xf32>
    %39 = arith.mulf %34, %38 : vector<8x8xf32>
    %40 = arith.truncf %39 : vector<8x8xf32> to vector<8x8xbf16>
    %cst_15 = arith.constant dense<0.000000e+00> : vector<8x8xf32>
    %41 = tpu.matmul %40, %27, %cst_15 {dimension_numbers = #tpu.dot_dimension_numbers<[1], [0], [0], [1], [0, 0, 1, 1], [], []>} : vector<8x8xbf16>, vector<8x8xbf16>, vector<8x8xf32> -> vector<8x8xf32>
    %42 = arith.truncf %41 : vector<8x8xf32> to vector<8x8xbf16>
    %c0_16 = arith.constant 0 : index
    %c0_17 = arith.constant 0 : index
    %43 = vector.load %arg11[%c0_16, %c0_17] : memref<8x32xbf16, #tpu.memory_space<vmem>>, vector<8x8xbf16>
    tpu.vector_store %arg11[%c0_16, %c0_17], %42 {strides = array<i32>} : memref<8x32xbf16, #tpu.memory_space<vmem>>, vector<8x8xbf16>,
    %44 = vector.extract_strided_slice %15 {offsets = [0, 32], sizes = [8, 32], strides = [1, 1]} : vector<8x128xbf16> to vector<8x32xbf16>
    %c0_18 = arith.constant 0 : index
    %c32 = arith.constant 32 : index
    %45 = vector.load %arg10[%c0_18, %c32] : memref<8x160xbf16, #tpu.memory_space<vmem>>, vector<8x32xbf16>
    %c0_19 = arith.constant 0 : index
    %c136 = arith.constant 136 : index
    %46 = vector.load %arg10[%c0_19, %c136] : memref<8x160xbf16, #tpu.memory_space<vmem>>, vector<8x8xbf16>
    %cst_20 = arith.constant dense<0.000000e+00> : vector<8x8xf32>
    %47 = tpu.matmul %44, %45, %cst_20 {dimension_numbers = #tpu.dot_dimension_numbers<[1], [1], [0], [0], [0, 0, 1, 0], [], []>} : vector<8x32xbf16>, vector<8x32xbf16>, vector<8x8xf32> -> vector<8x8xf32>
    %48 = arith.addf %47, %24 : vector<8x8xf32>
    %cst_21 = arith.constant dense<0xFF800000> : vector<8xf32>
    %49 = vector.multi_reduction <maximumf>, %48, %cst_21 [1] : vector<8x8xf32> to vector<8xf32>
    %50 = vector.shape_cast %49 : vector<8xf32> to vector<8x1xf32>
    %51 = vector.broadcast %50 : vector<8x1xf32> to vector<8x8xf32>
    %52 = arith.subf %48, %51 : vector<8x8xf32>
    %53 = math.exp %52 : vector<8x8xf32>
    %cst_22 = arith.constant dense<0.000000e+00> : vector<8xf32>
    %54 = vector.multi_reduction <add>, %53, %cst_22 [1] : vector<8x8xf32> to vector<8xf32>
    %55 = vector.shape_cast %54 : vector<8xf32> to vector<8x1xf32>
    %56 = tpu.reciprocal %55 {approx = true} : vector<8x1xf32> -> vector<8x1xf32>
    %57 = vector.broadcast %56 : vector<8x1xf32> to vector<8x8xf32>
    %58 = arith.mulf %53, %57 : vector<8x8xf32>
    %59 = arith.truncf %58 : vector<8x8xf32> to vector<8x8xbf16>
    %cst_23 = arith.constant dense<0.000000e+00> : vector<8x8xf32>
    %60 = tpu.matmul %59, %46, %cst_23 {dimension_numbers = #tpu.dot_dimension_numbers<[1], [0], [0], [1], [0, 0, 1, 1], [], []>} : vector<8x8xbf16>, vector<8x8xbf16>, vector<8x8xf32> -> vector<8x8xf32>
    %61 = arith.truncf %60 : vector<8x8xf32> to vector<8x8xbf16>
    %c0_24 = arith.constant 0 : index
    %c8 = arith.constant 8 : index
    %62 = vector.load %arg11[%c0_24, %c8] : memref<8x32xbf16, #tpu.memory_space<vmem>>, vector<8x8xbf16>
    tpu.vector_store %arg11[%c0_24, %c8], %61 {strides = array<i32>} : memref<8x32xbf16, #tpu.memory_space<vmem>>, vector<8x8xbf16>,
    %63 = vector.extract_strided_slice %15 {offsets = [0, 64], sizes = [8, 32], strides = [1, 1]} : vector<8x128xbf16> to vector<8x32xbf16>
    %c0_25 = arith.constant 0 : index
    %c64 = arith.constant 64 : index
    %64 = vector.load %arg10[%c0_25, %c64] : memref<8x160xbf16, #tpu.memory_space<vmem>>, vector<8x32xbf16>
    %c0_26 = arith.constant 0 : index
    %c144 = arith.constant 144 : index
    %65 = vector.load %arg10[%c0_26, %c144] : memref<8x160xbf16, #tpu.memory_space<vmem>>, vector<8x8xbf16>
    %cst_27 = arith.constant dense<0.000000e+00> : vector<8x8xf32>
    %66 = tpu.matmul %63, %64, %cst_27 {dimension_numbers = #tpu.dot_dimension_numbers<[1], [1], [0], [0], [0, 0, 1, 0], [], []>} : vector<8x32xbf16>, vector<8x32xbf16>, vector<8x8xf32> -> vector<8x8xf32>
    %67 = arith.addf %66, %24 : vector<8x8xf32>
    %cst_28 = arith.constant dense<0xFF800000> : vector<8xf32>
    %68 = vector.multi_reduction <maximumf>, %67, %cst_28 [1] : vector<8x8xf32> to vector<8xf32>
    %69 = vector.shape_cast %68 : vector<8xf32> to vector<8x1xf32>
    %70 = vector.broadcast %69 : vector<8x1xf32> to vector<8x8xf32>
    %71 = arith.subf %67, %70 : vector<8x8xf32>
    %72 = math.exp %71 : vector<8x8xf32>
    %cst_29 = arith.constant dense<0.000000e+00> : vector<8xf32>
    %73 = vector.multi_reduction <add>, %72, %cst_29 [1] : vector<8x8xf32> to vector<8xf32>
    %74 = vector.shape_cast %73 : vector<8xf32> to vector<8x1xf32>
    %75 = tpu.reciprocal %74 {approx = true} : vector<8x1xf32> -> vector<8x1xf32>
    %76 = vector.broadcast %75 : vector<8x1xf32> to vector<8x8xf32>
    %77 = arith.mulf %72, %76 : vector<8x8xf32>
    %78 = arith.truncf %77 : vector<8x8xf32> to vector<8x8xbf16>
    %cst_30 = arith.constant dense<0.000000e+00> : vector<8x8xf32>
    %79 = tpu.matmul %78, %65, %cst_30 {dimension_numbers = #tpu.dot_dimension_numbers<[1], [0], [0], [1], [0, 0, 1, 1], [], []>} : vector<8x8xbf16>, vector<8x8xbf16>, vector<8x8xf32> -> vector<8x8xf32>
    %80 = arith.truncf %79 : vector<8x8xf32> to vector<8x8xbf16>
    %c0_31 = arith.constant 0 : index
    %c16 = arith.constant 16 : index
    %81 = vector.load %arg11[%c0_31, %c16] : memref<8x32xbf16, #tpu.memory_space<vmem>>, vector<8x8xbf16>
    tpu.vector_store %arg11[%c0_31, %c16], %80 {strides = array<i32>} : memref<8x32xbf16, #tpu.memory_space<vmem>>, vector<8x8xbf16>,
    %82 = vector.extract_strided_slice %15 {offsets = [0, 96], sizes = [8, 32], strides = [1, 1]} : vector<8x128xbf16> to vector<8x32xbf16>
    %c0_32 = arith.constant 0 : index
    %c96 = arith.constant 96 : index
    %83 = vector.load %arg10[%c0_32, %c96] : memref<8x160xbf16, #tpu.memory_space<vmem>>, vector<8x32xbf16>
    %c0_33 = arith.constant 0 : index
    %c152 = arith.constant 152 : index
    %84 = vector.load %arg10[%c0_33, %c152] : memref<8x160xbf16, #tpu.memory_space<vmem>>, vector<8x8xbf16>
    %cst_34 = arith.constant dense<0.000000e+00> : vector<8x8xf32>
    %85 = tpu.matmul %82, %83, %cst_34 {dimension_numbers = #tpu.dot_dimension_numbers<[1], [1], [0], [0], [0, 0, 1, 0], [], []>} : vector<8x32xbf16>, vector<8x32xbf16>, vector<8x8xf32> -> vector<8x8xf32>
    %86 = arith.addf %85, %24 : vector<8x8xf32>
    %cst_35 = arith.constant dense<0xFF800000> : vector<8xf32>
    %87 = vector.multi_reduction <maximumf>, %86, %cst_35 [1] : vector<8x8xf32> to vector<8xf32>
    %88 = vector.shape_cast %87 : vector<8xf32> to vector<8x1xf32>
    %89 = vector.broadcast %88 : vector<8x1xf32> to vector<8x8xf32>
    %90 = arith.subf %86, %89 : vector<8x8xf32>
    %91 = math.exp %90 : vector<8x8xf32>
    %cst_36 = arith.constant dense<0.000000e+00> : vector<8xf32>
    %92 = vector.multi_reduction <add>, %91, %cst_36 [1] : vector<8x8xf32> to vector<8xf32>
    %93 = vector.shape_cast %92 : vector<8xf32> to vector<8x1xf32>
    %94 = tpu.reciprocal %93 {approx = true} : vector<8x1xf32> -> vector<8x1xf32>
    %95 = vector.broadcast %94 : vector<8x1xf32> to vector<8x8xf32>
    %96 = arith.mulf %91, %95 : vector<8x8xf32>
    %97 = arith.truncf %96 : vector<8x8xf32> to vector<8x8xbf16>
    %cst_37 = arith.constant dense<0.000000e+00> : vector<8x8xf32>
    %98 = tpu.matmul %97, %84, %cst_37 {dimension_numbers = #tpu.dot_dimension_numbers<[1], [0], [0], [1], [0, 0, 1, 1], [], []>} : vector<8x8xbf16>, vector<8x8xbf16>, vector<8x8xf32> -> vector<8x8xf32>
    %99 = arith.truncf %98 : vector<8x8xf32> to vector<8x8xbf16>
    %c0_38 = arith.constant 0 : index
    %c24 = arith.constant 24 : index
    %100 = vector.load %arg11[%c0_38, %c24] : memref<8x32xbf16, #tpu.memory_space<vmem>>, vector<8x8xbf16>
    tpu.vector_store %arg11[%c0_38, %c24], %99 {strides = array<i32>} : memref<8x32xbf16, #tpu.memory_space<vmem>>, vector<8x8xbf16>,
    %c0_39 = arith.constant 0 : index
    %c0_40 = arith.constant 0 : index
    %101 = vector.load %arg11[%c0_39, %c0_40] : memref<8x32xbf16, #tpu.memory_space<vmem>>, vector<8x32xbf16>
    %c0_41 = arith.constant 0 : index
    %c0_42 = arith.constant 0 : index
    %102 = vector.load %arg7[%c0_41, %c0_42] : memref<32x32xbf16, #tpu.memory_space<vmem>>, vector<32x32xbf16>
    %cst_43 = arith.constant dense<0.000000e+00> : vector<8x32xf32>
    %103 = tpu.matmul %101, %102, %cst_43 {dimension_numbers = #tpu.dot_dimension_numbers<[1], [0], [0], [1], [0, 0, 1, 1], [], []>} : vector<8x32xbf16>, vector<32x32xbf16>, vector<8x32xf32> -> vector<8x32xf32>
    %c0_44 = arith.constant 0 : index
    %c0_45 = arith.constant 0 : index
    %104 = vector.load %arg8[%c0_44, %c0_45] : memref<1x32xbf16, #tpu.memory_space<vmem>>, vector<1x32xbf16>
    %105 = arith.extf %104 : vector<1x32xbf16> to vector<1x32xf32>
    %106 = vector.broadcast %105 : vector<1x32xf32> to vector<8x32xf32>
    %107 = arith.addf %103, %106 : vector<8x32xf32>
    %c0_46 = arith.constant 0 : index
    %c0_47 = arith.constant 0 : index
    %c0_48 = arith.constant 0 : index
    %108 = vector.load %arg9[%c0_46, %c0_47, %c0_48] : memref<1x8x32xf32, #tpu.memory_space<vmem>>, vector<1x8x32xf32>
    %109 = vector.shape_cast %108 : vector<1x8x32xf32> to vector<8x32xf32>
    %110 = vector.shape_cast %107 : vector<8x32xf32> to vector<1x8x32xf32>
    tpu.vector_store %arg9[%c0_46, %c0_47, %c0_48], %110 {strides = array<i32>} : memref<1x8x32xf32, #tpu.memory_space<vmem>>, vector<1x8x32xf32>,
    return
  }
  func.func @transform_0(%arg0: i32, %arg1: i32) -> (i32, i32, i32) {
    %c0_i32 = arith.constant 0 : i32
    %c0_i32_0 = arith.constant 0 : i32
    %c0_i32_1 = arith.constant 0 : i32
    return %arg0, %c0_i32, %c0_i32_0 : i32, i32, i32
  }
  func.func @transform_1(%arg0: i32, %arg1: i32) -> (i32, i32) {
    %c0_i32 = arith.constant 0 : i32
    %c0_i32_0 = arith.constant 0 : i32
    %c0_i32_1 = arith.constant 0 : i32
    return %c0_i32, %c0_i32_0 : i32, i32
  }
  func.func @transform_2(%arg0: i32, %arg1: i32) -> (i32, i32) {
    %c0_i32 = arith.constant 0 : i32
    %c0_i32_0 = arith.constant 0 : i32
    %c0_i32_1 = arith.constant 0 : i32
    return %c0_i32, %c0_i32_0 : i32, i32
  }
  func.func @transform_3(%arg0: i32, %arg1: i32) -> (i32, i32) {
    %c0_i32 = arith.constant 0 : i32
    %c0_i32_0 = arith.constant 0 : i32
    %c0_i32_1 = arith.constant 0 : i32
    return %c0_i32, %c0_i32_0 : i32, i32
  }
  func.func @transform_4(%arg0: i32, %arg1: i32) -> (i32, i32) {
    %c0_i32 = arith.constant 0 : i32
    %c0_i32_0 = arith.constant 0 : i32
    %c0_i32_1 = arith.constant 0 : i32
    return %c0_i32, %c0_i32_0 : i32, i32
  }
  func.func @transform_5(%arg0: i32, %arg1: i32) -> (i32, i32) {
    %c0_i32 = arith.constant 0 : i32
    %c0_i32_0 = arith.constant 0 : i32
    %c0_i32_1 = arith.constant 0 : i32
    return %c0_i32, %c0_i32_0 : i32, i32
  }
  func.func @transform_6(%arg0: i32, %arg1: i32) -> (i32, i32) {
    %c0_i32 = arith.constant 0 : i32
    %c0_i32_0 = arith.constant 0 : i32
    %c0_i32_1 = arith.constant 0 : i32
    return %c0_i32, %c0_i32_0 : i32, i32
  }
  func.func @transform_7(%arg0: i32, %arg1: i32) -> (i32, i32, i32) {
    %c0_i32 = arith.constant 0 : i32
    %c0_i32_0 = arith.constant 0 : i32
    return %arg0, %arg1, %c0_i32 : i32, i32, i32
  }
}

</mosaic_0001>

<llo_original>
// kernel: tpu_custom_call.1
$region0: #{tpu_custom_call.1}
  #allocation0 [shape = 'u32[]', space=smem, size = 0x4, offset = 0x4, fixed_abs, tag = 'smem constant byte address 0x4 - core index']
  #allocation1 [shape = 'u32[72,128]{1,0:T(1,128)}', space=vmem, size = 0x9000, scoped, tag = 'internal scratch']
  #allocation2 [shape = 'bf16[8,160]{1,0:T(8,128)(2,1)}', space=vmem, size = 0x1000, scoped, tag = 'scratch operand']
  #allocation3 [shape = 'bf16[8,32]{1,0:T(8,128)(2,1)}', space=vmem, size = 0x800, scoped, tag = 'scratch operand']
  %s0 = inlined_call_operand.hbm [shape: f32[2,8,32], index: 0, kind: input, shape index: {}]
  %s1 = inlined_call_operand.hbm [shape: bf16[32,128], index: 1, kind: input, shape index: {}]
  %s2 = inlined_call_operand.vmem [shape: bf16[1,128], index: 2, kind: input, shape index: {}]
  %s3 = inlined_call_operand.hbm [shape: bf16[32,160], index: 3, kind: input, shape index: {}]
  %s4 = inlined_call_operand.vmem [shape: bf16[1,160], index: 4, kind: input, shape index: {}]
  %s5 = inlined_call_operand.hbm [shape: bf16[32,32], index: 5, kind: input, shape index: {}]
  %s6 = inlined_call_operand.vmem [shape: bf16[1,32], index: 6, kind: input, shape index: {}]
  %s7 = inlined_call_operand.hbm [shape: f32[2,8,32], index: 7, kind: output, shape index: {}]
  %s8 = sld [smem:[#allocation0]]
  $region81: #{tpu_custom_call.1} parent=0
    _
  %s10 = ssub.s32 1, %s8
  %s11 = scalar_select 0, %s10, %s8
  $region1: #{tpu_custom_call.1} parent=0
    #allocation4 [shape = 'u8[4096]{0}', space=vmem, size = 0x1000, scoped, tag = 'input window, operand 0, single buffered']
    #allocation5 [shape = 's32[2]{0}', space=sflag, size = 0x8, scoped, tag = 'scoped memory for tpu_custom_call.1']
    #allocation6 [shape = 's32[2]{0}', space=sflag, size = 0x8, scoped, tag = 'scoped memory for tpu_custom_call.1']
    #allocation7 [shape = 'u8[8192]{0}', space=vmem, size = 0x2000, scoped, tag = 'input window, operand 1, single buffered']
    #allocation8 [shape = 's32[1]{0}', space=sflag, size = 0x4, scoped, tag = 'scoped memory for tpu_custom_call.1']
    #allocation9 [shape = 'u8[16384]{0}', space=vmem, size = 0x4000, scoped, tag = 'input window, operand 3, single buffered']
    #allocation10 [shape = 'u8[8192]{0}', space=vmem, size = 0x2000, scoped, tag = 'input window, operand 5, single buffered']
    #allocation11 [shape = 's32[1]{0}', space=sflag, size = 0x4, scoped, tag = 'scoped memory for tpu_custom_call.1']
    #allocation12 [shape = 'u8[8192]{0}', space=vmem, size = 0x2000, scoped, tag = 'output window, operand 0']
    %12 = vsyncpa [#allocation5], 0
    %13 = vsyncpa [#allocation8], 0
    %14 = vsyncpa [#allocation11], 0
    %15 = vsyncpa [#allocation6], 0
    %s16 = scalar_lea.sflag [#allocation6], 1
    %17 = vsyncpa %s16, 0
    loop: start=0, step=1, limit=4
    $region2: #{tpu_custom_call.1} parent=1 // loop_pre_header
      _
    $region3: #{tpu_custom_call.1} parent=1 // loop_header
      %s19 = sphi 0, %s23
      %p20 = scmp.ge.s32.totalorder %s19, 4
      %s26 = sphi 0, %s38
      %s27 = sphi 0, %s34
      %s28 = sphi 0, %s26
      %s29 = sphi 0, %s27
      %s30 = sphi 0, %s28
      %s31 = sphi 0, %s29
      %s41 = sphi 0, %s43
      %s44 = sphi 0, %s41
      %s45 = sphi 0, %s44
      %s61 = sphi 0, %s45
      %s65 = sphi 0, %s65
      %s67 = sphi 0, %s65
      %s68 = sphi 0, %s67
      %s82 = sphi 0, %s68
      %s86 = sphi 0, %s86
      %s88 = sphi 0, %s86
      %s89 = sphi 0, %s88
      %s103 = sphi 0, %s89
      %s107 = sphi 0, %s107
      %s109 = sphi 0, %s107
      %s110 = sphi 0, %s109
      %s124 = sphi 0, %s110
      %s128 = sphi 0, %s128
      %s130 = sphi 0, %s128
      %s131 = sphi 0, %s130
      %s145 = sphi 0, %s131
      %s149 = sphi 0, %s149
      %s151 = sphi 0, %s149
      %s152 = sphi 0, %s151
      %s166 = sphi 0, %s152
      %s170 = sphi 0, %s170
      %s172 = sphi 0, %s170
      %s173 = sphi 0, %s172
      %s187 = sphi 0, %s173
      %s195 = sphi 0, %s197
      %s198 = sphi 0, %s195
      %s199 = sphi 0, %s198
      %s215 = sphi 0, %s199
    $region4: #{tpu_custom_call.1} parent=1 // loop_header_branch
      %22 = sbr.rel (%p20) target = $region8
    $region5: #{tpu_custom_call.1} parent=1 // loop_body
      %s24 = ssub.s32 %s19, 1
      %s25 = ssub.s32 %s19, 2
      %s32 = sadd.s32 1, %s27
      %p33 = scmp.ge.s32.totalorder %s32, 1
      %s34 = scalar_select %p33, 0, %s32
      %s35 = sadd.s32 1, %s26
      %s36 = scalar_select %p33, %s35, %s26
      %p37 = scmp.ge.s32.totalorder %s36, 2
      %s38 = scalar_select %p37, 0, %s36
      %s39 = ssub.s32 %s26, %s38
      %p40 = scmp.eq.s32.totalorder %s39, 0
      %s42 = sadd.s32 %s41, 1
      %s43 = scalar_select %p40, %s41, %s42
      %p46 = pneg %p40
      %p47 = scmp.eq.s32.totalorder %s19, 1
      %p48 = por %p46, %p47
      %p49 = scmp.ne.s32.totalorder %s41, %s44
      %p50 = scmp.eq.s32.totalorder %s19, 0
      %p51 = por %p49, %p50
      %p52 = scmp.ne.s32.totalorder %s41, %s44
      %p53 = scmp.eq.s32.totalorder %s24, 1
      %p54 = por %p52, %p53
      %p55 = scmp.ne.s32.totalorder %s44, %s45
      %p56 = scmp.eq.s32.totalorder %s24, 0
      %p57 = por %p55, %p56
      %p58 = scmp.ne.s32.totalorder %s44, %s45
      %p59 = scmp.eq.s32.totalorder %s25, 1
      %p60 = por %p58, %p59
      %p62 = scmp.ne.s32.totalorder %s45, %s61
      %p63 = scmp.eq.s32.totalorder %s25, 0
      %p64 = por %p62, %p63
      %s66 = sadd.s32 %s65, 1
      %p69 = scmp.eq.s32.totalorder %s19, 1
      %p70 = scmp.ne.s32.totalorder %s65, %s67
      %p71 = scmp.eq.s32.totalorder %s19, 0
      %p72 = por %p70, %p71
      %p73 = scmp.ne.s32.totalorder %s65, %s67
      %p74 = scmp.eq.s32.totalorder %s24, 1
      %p75 = por %p73, %p74
      %p76 = scmp.ne.s32.totalorder %s67, %s68
      %p77 = scmp.eq.s32.totalorder %s24, 0
      %p78 = por %p76, %p77
      %p79 = scmp.ne.s32.totalorder %s67, %s68
      %p80 = scmp.eq.s32.totalorder %s25, 1
      %p81 = por %p79, %p80
      %p83 = scmp.ne.s32.totalorder %s68, %s82
      %p84 = scmp.eq.s32.totalorder %s25, 0
      %p85 = por %p83, %p84
      %s87 = sadd.s32 %s86, 1
      %p90 = scmp.eq.s32.totalorder %s19, 1
      %p91 = scmp.ne.s32.totalorder %s86, %s88
      %p92 = scmp.eq.s32.totalorder %s19, 0
      %p93 = por %p91, %p92
      %p94 = scmp.ne.s32.totalorder %s86, %s88
      %p95 = scmp.eq.s32.totalorder %s24, 1
      %p96 = por %p94, %p95
      %p97 = scmp.ne.s32.totalorder %s88, %s89
      %p98 = scmp.eq.s32.totalorder %s24, 0
      %p99 = por %p97, %p98
      %p100 = scmp.ne.s32.totalorder %s88, %s89
      %p101 = scmp.eq.s32.totalorder %s25, 1
      %p102 = por %p100, %p101
      %p104 = scmp.ne.s32.totalorder %s89, %s103
      %p105 = scmp.eq.s32.totalorder %s25, 0
      %p106 = por %p104, %p105
      %s108 = sadd.s32 %s107, 1
      %p111 = scmp.eq.s32.totalorder %s19, 1
      %p112 = scmp.ne.s32.totalorder %s107, %s109
      %p113 = scmp.eq.s32.totalorder %s19, 0
      %p114 = por %p112, %p113
      %p115 = scmp.ne.s32.totalorder %s107, %s109
      %p116 = scmp.eq.s32.totalorder %s24, 1
      %p117 = por %p115, %p116
      %p118 = scmp.ne.s32.totalorder %s109, %s110
      %p119 = scmp.eq.s32.totalorder %s24, 0
      %p120 = por %p118, %p119
      %p121 = scmp.ne.s32.totalorder %s109, %s110
      %p122 = scmp.eq.s32.totalorder %s25, 1
      %p123 = por %p121, %p122
      %p125 = scmp.ne.s32.totalorder %s110, %s124
      %p126 = scmp.eq.s32.totalorder %s25, 0
      %p127 = por %p125, %p126
      %s129 = sadd.s32 %s128, 1
      %p132 = scmp.eq.s32.totalorder %s19, 1
      %p133 = scmp.ne.s32.totalorder %s128, %s130
      %p134 = scmp.eq.s32.totalorder %s19, 0
      %p135 = por %p133, %p134
      %p136 = scmp.ne.s32.totalorder %s128, %s130
      %p137 = scmp.eq.s32.totalorder %s24, 1
      %p138 = por %p136, %p137
      %p139 = scmp.ne.s32.totalorder %s130, %s131
      %p140 = scmp.eq.s32.totalorder %s24, 0
      %p141 = por %p139, %p140
      %p142 = scmp.ne.s32.totalorder %s130, %s131
      %p143 = scmp.eq.s32.totalorder %s25, 1
      %p144 = por %p142, %p143
      %p146 = scmp.ne.s32.totalorder %s131, %s145
      %p147 = scmp.eq.s32.totalorder %s25, 0
      %p148 = por %p146, %p147
      %s150 = sadd.s32 %s149, 1
      %p153 = scmp.eq.s32.totalorder %s19, 1
      %p154 = scmp.ne.s32.totalorder %s149, %s151
      %p155 = scmp.eq.s32.totalorder %s19, 0
      %p156 = por %p154, %p155
      %p157 = scmp.ne.s32.totalorder %s149, %s151
      %p158 = scmp.eq.s32.totalorder %s24, 1
      %p159 = por %p157, %p158
      %p160 = scmp.ne.s32.totalorder %s151, %s152
      %p161 = scmp.eq.s32.totalorder %s24, 0
      %p162 = por %p160, %p161
      %p163 = scmp.ne.s32.totalorder %s151, %s152
      %p164 = scmp.eq.s32.totalorder %s25, 1
      %p165 = por %p163, %p164
      %p167 = scmp.ne.s32.totalorder %s152, %s166
      %p168 = scmp.eq.s32.totalorder %s25, 0
      %p169 = por %p167, %p168
      %s171 = sadd.s32 %s170, 1
      %p174 = scmp.eq.s32.totalorder %s19, 1
      %p175 = scmp.ne.s32.totalorder %s170, %s172
      %p176 = scmp.eq.s32.totalorder %s19, 0
      %p177 = por %p175, %p176
      %p178 = scmp.ne.s32.totalorder %s170, %s172
      %p179 = scmp.eq.s32.totalorder %s24, 1
      %p180 = por %p178, %p179
      %p181 = scmp.ne.s32.totalorder %s172, %s173
      %p182 = scmp.eq.s32.totalorder %s24, 0
      %p183 = por %p181, %p182
      %p184 = scmp.ne.s32.totalorder %s172, %s173
      %p185 = scmp.eq.s32.totalorder %s25, 1
      %p186 = por %p184, %p185
      %p188 = scmp.ne.s32.totalorder %s173, %s187
      %p189 = scmp.eq.s32.totalorder %s25, 0
      %p190 = por %p188, %p189
      %s191 = ssub.s32 %s26, %s38
      %s192 = ssub.s32 %s27, %s34
      %s193 = sor.u32 %s191, %s192
      %p194 = scmp.eq.s32.totalorder %s193, 0
      %s196 = sadd.s32 %s195, 1
      %s197 = scalar_select %p194, %s195, %s196
      %p200 = pneg %p194
      %p201 = scmp.eq.s32.totalorder %s19, 1
      %p202 = por %p200, %p201
      %p203 = scmp.ne.s32.totalorder %s195, %s198
      %p204 = scmp.eq.s32.totalorder %s19, 0
      %p205 = por %p203, %p204
      %p206 = scmp.ne.s32.totalorder %s195, %s198
      %p207 = scmp.eq.s32.totalorder %s24, 1
      %p208 = por %p206, %p207
      %p209 = scmp.ne.s32.totalorder %s198, %s199
      %p210 = scmp.eq.s32.totalorder %s24, 0
      %p211 = por %p209, %p210
      %p212 = scmp.ne.s32.totalorder %s198, %s199
      %p213 = scmp.eq.s32.totalorder %s25, 1
      %p214 = por %p212, %p213
      %p216 = scmp.ne.s32.totalorder %s199, %s215
      %p217 = scmp.eq.s32.totalorder %s25, 0
      %p218 = por %p216, %p217
      %p219 = scmp.le.s32.totalorder 1, %s19
      %p220 = scmp.lt.s32.totalorder %s19, 3
      %p221 = pnand %p219, %p220
      %p222 = pneg %p221
      // Predicated region
      $region9: #{tpu_custom_call.1} parent=5 // pred_check
        _
      $region10: #{tpu_custom_call.1} parent=5 // pred_check_branch
        %224 = sbr.rel (%p221) target = $region12
      $region11: #{tpu_custom_call.1} parent=5 // pred_region
        %s225 = ssub.s32 %s19, 1
        // Predicated region
        $region13: #{tpu_custom_call.1} parent=11 // pred_check
          %p226 = pneg %p57
        $region14: #{tpu_custom_call.1} parent=11 // pred_check_branch
          %228 = sbr.rel (%p226) target = $region16
        $region15: #{tpu_custom_call.1} parent=11 // pred_region
          %230 = vsyncadd [#allocation5], 0
          %s231 = smul.addr %s28, 8
          %s232 = scalar_lea.hbm %s0, %s231
          %s234 = sshll.u32 %s232, 4
          %s235 = int_to_ptr.hbm [resolvable:$true] %s234
          %s236 = sshll.u32 [#allocation4], 4
          %s237 = int_to_ptr.vmem [resolvable:$true] %s236
          %239 = dma.hbm_to_vmem [thread:$0]  %s235, 128, %s237, [#allocation5]
        $region16: #{tpu_custom_call.1} parent=11 // pred_fallthru
          _
        // Predicated region
        $region17: #{tpu_custom_call.1} parent=11 // pred_check
          %p240 = pneg %p78
        $region18: #{tpu_custom_call.1} parent=11 // pred_check_branch
          %242 = sbr.rel (%p240) target = $region20
        $region19: #{tpu_custom_call.1} parent=11 // pred_region
          %244 = vsyncadd [#allocation8], 0
          %s245 = sshll.u32 %s1, 4
          %s246 = int_to_ptr.hbm [resolvable:$true] %s245
          %s247 = sshll.u32 [#allocation7], 4
          %s248 = int_to_ptr.vmem [resolvable:$true] %s247
          %253 = dma.hbm_to_vmem [thread:$0]  %s246, 256, %s248, [#allocation8], 64, 64, 4
        $region20: #{tpu_custom_call.1} parent=11 // pred_fallthru
          _
        // Predicated region
        $region21: #{tpu_custom_call.1} parent=11 // pred_check
          %p254 = pneg %p99
        $region22: #{tpu_custom_call.1} parent=11 // pred_check_branch
          %256 = sbr.rel (%p254) target = $region24
        $region23: #{tpu_custom_call.1} parent=11 // pred_region
          _
        $region24: #{tpu_custom_call.1} parent=11 // pred_fallthru
          _
        // Predicated region
        $region25: #{tpu_custom_call.1} parent=11 // pred_check
          %p257 = pneg %p120
        $region26: #{tpu_custom_call.1} parent=11 // pred_check_branch
          %259 = sbr.rel (%p257) target = $region28
        $region27: #{tpu_custom_call.1} parent=11 // pred_region
          %261 = vsyncadd [#allocation8], 0
          %s262 = sshll.u32 %s3, 4
          %s263 = int_to_ptr.hbm [resolvable:$true] %s262
          %s264 = sshll.u32 [#allocation9], 4
          %s265 = int_to_ptr.vmem [resolvable:$true] %s264
          %270 = dma.hbm_to_vmem [thread:$0]  %s263, 512, %s265, [#allocation8], 128, 128, 8
        $region28: #{tpu_custom_call.1} parent=11 // pred_fallthru
          _
        // Predicated region
        $region29: #{tpu_custom_call.1} parent=11 // pred_check
          %p271 = pneg %p141
        $region30: #{tpu_custom_call.1} parent=11 // pred_check_branch
          %273 = sbr.rel (%p271) target = $region32
        $region31: #{tpu_custom_call.1} parent=11 // pred_region
          _
        $region32: #{tpu_custom_call.1} parent=11 // pred_fallthru
          _
        // Predicated region
        $region33: #{tpu_custom_call.1} parent=11 // pred_check
          %p274 = pneg %p162
        $region34: #{tpu_custom_call.1} parent=11 // pred_check_branch
          %276 = sbr.rel (%p274) target = $region36
        $region35: #{tpu_custom_call.1} parent=11 // pred_region
          %278 = vsyncadd [#allocation11], 0
          %s279 = sshll.u32 %s5, 4
          %s280 = int_to_ptr.hbm [resolvable:$true] %s279
          %s281 = sshll.u32 [#allocation10], 4
          %s282 = int_to_ptr.vmem [resolvable:$true] %s281
          %287 = dma.hbm_to_vmem [thread:$0]  %s280, 256, %s282, [#allocation11], 64, 64, 4
        $region36: #{tpu_custom_call.1} parent=11 // pred_fallthru
          _
        // Predicated region
        $region37: #{tpu_custom_call.1} parent=11 // pred_check
          %p288 = pneg %p183
        $region38: #{tpu_custom_call.1} parent=11 // pred_check_branch
          %290 = sbr.rel (%p288) target = $region40
        $region39: #{tpu_custom_call.1} parent=11 // pred_region
          _
        $region40: #{tpu_custom_call.1} parent=11 // pred_fallthru
          _
      $region12: #{tpu_custom_call.1} parent=5 // pred_fallthru
        _
      %p291 = scmp.lt.s32.totalorder %s19, 2
      // Predicated region
      $region41: #{tpu_custom_call.1} parent=5 // pred_check
        %p292 = pneg %p291
      $region42: #{tpu_custom_call.1} parent=5 // pred_check_branch
        %294 = sbr.rel (%p292) target = $region44
      $region43: #{tpu_custom_call.1} parent=5 // pred_region
        _
      $region44: #{tpu_custom_call.1} parent=5 // pred_fallthru
        _
      %p295 = scmp.le.s32.totalorder 1, %s19
      %p296 = scmp.lt.s32.totalorder %s19, 3
      %p297 = pnand %p295, %p296
      %p298 = pneg %p297
      // Predicated region
      $region45: #{tpu_custom_call.1} parent=5 // pred_check
        _
      $region46: #{tpu_custom_call.1} parent=5 // pred_check_branch
        %300 = sbr.rel (%p297) target = $region48
      $region47: #{tpu_custom_call.1} parent=5 // pred_region
        %s301 = ssub.s32 %s19, 1
        // Predicated region
        $region49: #{tpu_custom_call.1} parent=47 // pred_check
          %p302 = pneg %p57
        $region50: #{tpu_custom_call.1} parent=47 // pred_check_branch
          %304 = sbr.rel (%p302) target = $region52
        $region51: #{tpu_custom_call.1} parent=47 // pred_region
          %306 = dma.done [#allocation5], 128
        $region52: #{tpu_custom_call.1} parent=47 // pred_fallthru
          _
        // Predicated region
        $region53: #{tpu_custom_call.1} parent=47 // pred_check
          %p307 = pneg %p78
        $region54: #{tpu_custom_call.1} parent=47 // pred_check_branch
          %309 = sbr.rel (%p307) target = $region56
        $region55: #{tpu_custom_call.1} parent=47 // pred_region
          %311 = dma.done [#allocation8], 256
        $region56: #{tpu_custom_call.1} parent=47 // pred_fallthru
          _
        // Predicated region
        $region57: #{tpu_custom_call.1} parent=47 // pred_check
          %p312 = pneg %p120
        $region58: #{tpu_custom_call.1} parent=47 // pred_check_branch
          %314 = sbr.rel (%p312) target = $region60
        $region59: #{tpu_custom_call.1} parent=47 // pred_region
          %316 = dma.done [#allocation8], 512
        $region60: #{tpu_custom_call.1} parent=47 // pred_fallthru
          _
        // Predicated region
        $region61: #{tpu_custom_call.1} parent=47 // pred_check
          %p317 = pneg %p162
        $region62: #{tpu_custom_call.1} parent=47 // pred_check_branch
          %319 = sbr.rel (%p317) target = $region64
        $region63: #{tpu_custom_call.1} parent=47 // pred_region
          %321 = dma.done [#allocation11], 256
        $region64: #{tpu_custom_call.1} parent=47 // pred_fallthru
          _
        %p322 = pneg %p57
        %p323 = pneg %p54
        %p324 = pneg %p78
        %p325 = pneg %p75
        %p326 = pneg %p99
        %p327 = pneg %p96
        %p328 = pneg %p120
        %p329 = pneg %p117
        %p330 = pneg %p141
        %p331 = pneg %p138
        %p332 = pneg %p162
        %p333 = pneg %p159
        %p334 = pneg %p183
        %p335 = pneg %p180
        %p336 = pneg %p211
        %p337 = pneg %p208
        %s338 = sand.u32 %s198, 1
        %s339 = scalar_lea.sflag [#allocation6], %s338
        %s340 = sand.u32 %s198, 1
        %s341 = smul.addr %s340, 8
        %s342 = scalar_lea.vmem [#allocation12], %s341
        %p344 = scmp.eq.s32.totalorder %s29, 0
        // Predicated region
        $region65: #{tpu_custom_call.1} parent=47 // pred_check
          %p345 = pneg %p344
        $region66: #{tpu_custom_call.1} parent=47 // pred_check_branch
          %347 = sbr.rel (%p345) target = $region68
        $region67: #{tpu_custom_call.1} parent=47 // pred_region
          %v348 = vld [vmem:[#allocation4] sm:$0xff]
          %v349 = vpack.c.bf16 %v348, %v348
          %v350 = vld [vmem:[#allocation9] sm:$0xff]
          %v351 = vld [vmem:[#allocation9 + $0x8] sm:$0xff]
          %v352 = vld [vmem:[#allocation9 + $0x10] sm:$0xff]
          %v353 = vld [vmem:[#allocation9 + $0x18] sm:$0xff]
          %v354 = vld [vmem:[%s4] sm:$0x3]
          %v355 = vunpack.c.l.bf16 %v354
          %v357 = vperm.slane %v355, 0
          %v358 = vperm.slane %v355, 2
          %v361 = vperm.slane %v357, 0
          %v362 = vperm.slane %v358, 0
          %v367 = vunpack.c.l.b16 %v350
          %v368 = vunpack.c.h.b16 %v350
          %v369 = vunpack.c.l.b16 %v351
          %v370 = vunpack.c.h.b16 %v351
          %v371 = vunpack.c.l.b16 %v352
          %v372 = vunpack.c.h.b16 %v352
          %v373 = vunpack.c.l.b16 %v353
          %v374 = vunpack.c.h.b16 %v353
          %v375 = vpack.c.b16 %v369, %v367
          %v376 = vpack.c.b16 %v370, %v368
          %v377 = vpack.c.b16 %v373, %v371
          %v378 = vpack.c.b16 %v374, %v372
          %vm383 = vcmask 261120
          %v385 = vsel %vm383, %v349, 0
          %387 = vmatpush.bf16.msra.mxu0 0
          %388 = vmatpush.bf16.msra.mxu0 0
          %389 = vmatpush.bf16.msra.mxu0 0
          %390 = vmatpush.bf16.msra.mxu0 0
          %391 = vmatpush.bf16.msra.mxu0 0
          %392 = vmatpush.bf16.msra.mxu0 0
          %393 = vmatpush.bf16.msra.mxu0 %v377
          %394 = vmatpush.bf16.msra.mxu0 %v375
          %395 = vmatmul.bf16.gmra.mxu0 %v385
          %v396 = vpop.f32.mrf.mxu0
          %v397 = vadd.f32 %v361, %v396
          %v398 = vpop.f32.mrf.mxu0
          %399 = vdwg.mxu0
          %400 = vmatpush.bf16.msra.mxu0 0
          %401 = vmatpush.bf16.msra.mxu0 0
          %402 = vmatpush.bf16.msra.mxu0 0
          %403 = vmatpush.bf16.msra.mxu0 0
          %404 = vmatpush.bf16.msra.mxu0 0
          %405 = vmatpush.bf16.msra.mxu0 0
          %406 = vmatpush.bf16.msra.mxu0 %v378
          %407 = vmatpush.bf16.msra.mxu0 %v376
          %408 = vmatmul.bf16.gmra.mxu0 %v385
          %v409 = vpop.f32.mrf.mxu0
          %v410 = vadd.f32 %v362, %v409
          %v411 = vpop.f32.mrf.mxu0
          %412 = vdwg.mxu0
          %v413 = vpack.c.bf16 %v410, %v397
          %vm414 = vcmask 1043456
          %vm415 = vcmask 261124
          %vm416 = vmor %vm415, %vm414
          %417 = vst.msk [vmem:[#allocation2] sm:$0xff] %vm416, %v413
        $region68: #{tpu_custom_call.1} parent=47 // pred_fallthru
          _
        %s418 = smul.u32 %s29, 8
        %s419 = scalar_lea.vmem [#allocation4], %s418
        %v420 = vld [vmem:[%s419] sm:$0xff]
        %v421 = vpack.c.bf16 %v420, %v420
        %v422 = vld [vmem:[#allocation7] sm:$0xf]
        %v423 = vld [vmem:[#allocation7 + $0x4] sm:$0xf]
        %v424 = vld [vmem:[#allocation7 + $0x8] sm:$0xf]
        %v425 = vld [vmem:[#allocation7 + $0xc] sm:$0xf]
        %v426 = vld [vmem:[%s2] sm:$0x1]
        %v427 = vunpack.c.l.bf16 %v426
        %v428 = vperm.slane %v427, 0
        %v433 = vunpack.c.l.b16 %v422
        %v434 = vunpack.c.l.b16 %v423
        %v435 = vunpack.c.l.b16 %v424
        %v436 = vunpack.c.l.b16 %v425
        %v437 = vpack.c.b16 %v434, %v433
        %v438 = vpack.c.b16 %v436, %v435
        %vm441 = vcmask 261120
        %v443 = vsel %vm441, %v421, 0
        %445 = vmatpush.bf16.msra.mxu0 0
        %446 = vmatpush.bf16.msra.mxu0 0
        %447 = vmatpush.bf16.msra.mxu0 0
        %448 = vmatpush.bf16.msra.mxu0 0
        %449 = vmatpush.bf16.msra.mxu0 0
        %450 = vmatpush.bf16.msra.mxu0 0
        %451 = vmatpush.bf16.msra.mxu0 %v438
        %452 = vmatpush.bf16.msra.mxu0 %v437
        %453 = vmatmul.bf16.gmra.mxu0 %v443
        %v454 = vpop.f32.mrf.mxu0
        %v455 = vadd.f32 %v428, %v454
        %v456 = vpop.f32.mrf.mxu0
        %457 = vdwg.mxu0
        %v458 = vpack.c.bf16 %v455, %v455
        %v459 = vlaneseq
        %v460 = vshrl.u32 %v459, 7
        %v461 = vstv %s418
        %v462 = vadd.s32 %v461, %v460
        %v463 = vlaneseq
        %v464 = vand.u32 %v463, 127
        %vm465 = vcmp.le.s32.totalorder %v464, %v462
        %v466 = vsel %vm465, 0.0, -1e+30
        %v467 = vld [vmem:[#allocation2] sm:$0xf]
        %v468 = vld [vmem:[#allocation2 + $0x4] sm:$0xf]
        %v470 = vsel %vm441, %v458, 0
        %v473 = vsel %vm441, %v467, 0
        %475 = vmatpush.bf16.xpose.msra.mxu0 0
        %476 = vmatpush.bf16.xpose.msra.mxu0 0
        %477 = vmatpush.bf16.xpose.msra.mxu0 0
        %478 = vmatpush.bf16.xpose.msra.mxu0 0
        %479 = vmatpush.bf16.xpose.msra.mxu0 0
        %480 = vmatpush.bf16.xpose.msra.mxu0 0
        %481 = vmatpush.bf16.xpose.msra.mxu0 0
        %482 = vmatpush.bf16.xpose.msra.mxu0 %v473
        %483 = vmatmul.bf16.gmra.mxu0 %v470
        %v484 = vpop.f32.mrf.mxu0
        %v485 = vadd.f32 %v466, %v484
        %v486 = vpop.f32.mrf.mxu0
        %487 = vdwg.mxu0
        %vm488 = vcmask 64512
        %v489 = vsel %vm488, %v485, -inf
        %490 = vmax.xlane.f32.xlu0 %v489
        %v491 = vpop.xlane.xlu0 %490
        %v492 = vsub.f32 %v485, %v491
        %v493 = vmul.f32 %v492, 1.442695
        %v494 = vpow.pop %v493
        %v495 = vsel %vm488, %v494, 0.0
        %496 = vadd.xlane.f32.xlu0 %v495
        %v497 = vpop.xlane.xlu0 %496
        %v498 = vrcp.pop %v497
        %v499 = vmul.f32 %v494, %v498
        %v500 = vpack.c.bf16 %v499, %v499
        %v502 = vsel %vm488, %v500, 0
        %vm504 = vcmask 1043456
        %v506 = vsel %vm504, %v468, 0
        %508 = vmatpush.bf16.msra.mxu0 0
        %509 = vmatpush.bf16.msra.mxu0 0
        %510 = vmatpush.bf16.msra.mxu0 0
        %511 = vmatpush.bf16.msra.mxu0 0
        %512 = vmatpush.bf16.msra.mxu0 0
        %513 = vmatpush.bf16.msra.mxu0 0
        %514 = vmatpush.bf16.msra.mxu0 0
        %515 = vmatpush.bf16.msra.mxu0 %v506
        %516 = vmatmul.bf16.gmra.mxu0 %v502
        %v517 = vpop.f32.mrf.mxu0
        %v518 = vadd.f32 0.0, %v517
        %v519 = vpop.f32.mrf.mxu0
        %520 = vdwg.mxu0
        %v521 = vpack.c.bf16 %v518, %v518
        %vm522 = vcmask 60416
        %523 = vst.msk [vmem:[#allocation3] sm:$0xf] %vm522, %v521
        %v524 = vld [vmem:[#allocation2] sm:$0xf]
        %v525 = vld [vmem:[#allocation2 + $0x4] sm:$0xf]
        %v527 = vunpack.c.l.b16 %v458
        %v528 = vpack.c.b16 %v527, %v527
        %529 = vrot.lane.b32.xlu0 %v528, 96
        %v530 = vpop.permute.xlu0 %529
        %v532 = vunpack.c.l.b16 %v524
        %v533 = vpack.c.b16 %v532, %v532
        %534 = vrot.lane.b32.xlu0 %v533, 96
        %v535 = vpop.permute.xlu0 %534
        %v537 = vsel %vm441, %v530, 0
        %v540 = vsel %vm441, %v535, 0
        %542 = vmatpush.bf16.xpose.msra.mxu0 0
        %543 = vmatpush.bf16.xpose.msra.mxu0 0
        %544 = vmatpush.bf16.xpose.msra.mxu0 0
        %545 = vmatpush.bf16.xpose.msra.mxu0 0
        %546 = vmatpush.bf16.xpose.msra.mxu0 0
        %547 = vmatpush.bf16.xpose.msra.mxu0 0
        %548 = vmatpush.bf16.xpose.msra.mxu0 0
        %549 = vmatpush.bf16.xpose.msra.mxu0 %v540
        %550 = vmatmul.bf16.gmra.mxu0 %v537
        %v551 = vpop.f32.mrf.mxu0
        %v552 = vadd.f32 %v466, %v551
        %v553 = vpop.f32.mrf.mxu0
        %554 = vdwg.mxu0
        %v555 = vsel %vm488, %v552, -inf
        %556 = vmax.xlane.f32.xlu0 %v555
        %v557 = vpop.xlane.xlu0 %556
        %v558 = vsub.f32 %v552, %v557
        %v559 = vmul.f32 %v558, 1.442695
        %v560 = vpow.pop %v559
        %v561 = vsel %vm488, %v560, 0.0
        %562 = vadd.xlane.f32.xlu0 %v561
        %v563 = vpop.xlane.xlu0 %562
        %v564 = vrcp.pop %v563
        %v565 = vmul.f32 %v560, %v564
        %v566 = vpack.c.bf16 %v565, %v565
        %v568 = vunpack.c.l.b16 %v525
        %v569 = vpack.c.b16 %v568, %v568
        %570 = vrot.lane.b32.xlu0 %v569, 120
        %v571 = vpop.permute.xlu0 %570
        %v573 = vsel %vm488, %v566, 0
        %v576 = vsel %vm504, %v571, 0
        %578 = vmatpush.bf16.msra.mxu0 0
        %579 = vmatpush.bf16.msra.mxu0 0
        %580 = vmatpush.bf16.msra.mxu0 0
        %581 = vmatpush.bf16.msra.mxu0 0
        %582 = vmatpush.bf16.msra.mxu0 0
        %583 = vmatpush.bf16.msra.mxu0 0
        %584 = vmatpush.bf16.msra.mxu0 0
        %585 = vmatpush.bf16.msra.mxu0 %v576
        %586 = vmatmul.bf16.gmra.mxu0 %v573
        %v587 = vpop.f32.mrf.mxu0
        %v588 = vadd.f32 0.0, %v587
        %v589 = vpop.f32.mrf.mxu0
        %590 = vdwg.mxu0
        %v591 = vpack.c.bf16 %v588, %v588
        %593 = vrot.lane.b32.xlu0 %v591, 8
        %v594 = vpop.permute.xlu0 %593
        %vm596 = vcmask 126016
        %597 = vst.msk [vmem:[#allocation3] sm:$0xf] %vm596, %v594
        %v598 = vld [vmem:[#allocation2] sm:$0xf]
        %v599 = vld [vmem:[#allocation2 + $0x4] sm:$0xf]
        %600 = vrot.lane.b32.xlu0 %v528, 64
        %v601 = vpop.permute.xlu0 %600
        %v603 = vunpack.c.l.b16 %v598
        %v604 = vpack.c.b16 %v603, %v603
        %605 = vrot.lane.b32.xlu0 %v604, 64
        %v606 = vpop.permute.xlu0 %605
        %v608 = vsel %vm441, %v601, 0
        %v611 = vsel %vm441, %v606, 0
        %613 = vmatpush.bf16.xpose.msra.mxu0 0
        %614 = vmatpush.bf16.xpose.msra.mxu0 0
        %615 = vmatpush.bf16.xpose.msra.mxu0 0
        %616 = vmatpush.bf16.xpose.msra.mxu0 0
        %617 = vmatpush.bf16.xpose.msra.mxu0 0
        %618 = vmatpush.bf16.xpose.msra.mxu0 0
        %619 = vmatpush.bf16.xpose.msra.mxu0 0
        %620 = vmatpush.bf16.xpose.msra.mxu0 %v611
        %621 = vmatmul.bf16.gmra.mxu0 %v608
        %v622 = vpop.f32.mrf.mxu0
        %v623 = vadd.f32 %v466, %v622
        %v624 = vpop.f32.mrf.mxu0
        %625 = vdwg.mxu0
        %v626 = vsel %vm488, %v623, -inf
        %627 = vmax.xlane.f32.xlu0 %v626
        %v628 = vpop.xlane.xlu0 %627
        %v629 = vsub.f32 %v623, %v628
        %v630 = vmul.f32 %v629, 1.442695
        %v631 = vpow.pop %v630
        %v632 = vsel %vm488, %v631, 0.0
        %633 = vadd.xlane.f32.xlu0 %v632
        %v634 = vpop.xlane.xlu0 %633
        %v635 = vrcp.pop %v634
        %v636 = vmul.f32 %v631, %v635
        %v637 = vpack.c.bf16 %v636, %v636
        %v639 = vunpack.c.l.b16 %v599
        %v640 = vpack.c.b16 %v639, %v639
        %641 = vrot.lane.b32.xlu0 %v640, 112
        %v642 = vpop.permute.xlu0 %641
        %v644 = vsel %vm488, %v637, 0
        %v647 = vsel %vm504, %v642, 0
        %649 = vmatpush.bf16.msra.mxu0 0
        %650 = vmatpush.bf16.msra.mxu0 0
        %651 = vmatpush.bf16.msra.mxu0 0
        %652 = vmatpush.bf16.msra.mxu0 0
        %653 = vmatpush.bf16.msra.mxu0 0
        %654 = vmatpush.bf16.msra.mxu0 0
        %655 = vmatpush.bf16.msra.mxu0 0
        %656 = vmatpush.bf16.msra.mxu0 %v647
        %657 = vmatmul.bf16.gmra.mxu0 %v644
        %v658 = vpop.f32.mrf.mxu0
        %v659 = vadd.f32 0.0, %v658
        %v660 = vpop.f32.mrf.mxu0
        %661 = vdwg.mxu0
        %v662 = vpack.c.bf16 %v659, %v659
        %664 = vrot.lane.b32.xlu0 %v662, 16
        %v665 = vpop.permute.xlu0 %664
        %vm667 = vcmask 191616
        %668 = vst.msk [vmem:[#allocation3] sm:$0xf] %vm667, %v665
        %v669 = vld [vmem:[#allocation2] sm:$0xf]
        %v670 = vld [vmem:[#allocation2 + $0x4] sm:$0xf]
        %671 = vrot.lane.b32.xlu0 %v528, 32
        %v672 = vpop.permute.xlu0 %671
        %v674 = vunpack.c.l.b16 %v669
        %v675 = vpack.c.b16 %v674, %v674
        %676 = vrot.lane.b32.xlu0 %v675, 32
        %v677 = vpop.permute.xlu0 %676
        %v679 = vsel %vm441, %v672, 0
        %v682 = vsel %vm441, %v677, 0
        %684 = vmatpush.bf16.xpose.msra.mxu0 0
        %685 = vmatpush.bf16.xpose.msra.mxu0 0
        %686 = vmatpush.bf16.xpose.msra.mxu0 0
        %687 = vmatpush.bf16.xpose.msra.mxu0 0
        %688 = vmatpush.bf16.xpose.msra.mxu0 0
        %689 = vmatpush.bf16.xpose.msra.mxu0 0
        %690 = vmatpush.bf16.xpose.msra.mxu0 0
        %691 = vmatpush.bf16.xpose.msra.mxu0 %v682
        %692 = vmatmul.bf16.gmra.mxu0 %v679
        %v693 = vpop.f32.mrf.mxu0
        %v694 = vadd.f32 %v466, %v693
        %v695 = vpop.f32.mrf.mxu0
        %696 = vdwg.mxu0
        %v697 = vsel %vm488, %v694, -inf
        %698 = vmax.xlane.f32.xlu0 %v697
        %v699 = vpop.xlane.xlu0 %698
        %v700 = vsub.f32 %v694, %v699
        %v701 = vmul.f32 %v700, 1.442695
        %v702 = vpow.pop %v701
        %v703 = vsel %vm488, %v702, 0.0
        %704 = vadd.xlane.f32.xlu0 %v703
        %v705 = vpop.xlane.xlu0 %704
        %v706 = vrcp.pop %v705
        %v707 = vmul.f32 %v702, %v706
        %v708 = vpack.c.bf16 %v707, %v707
        %v710 = vunpack.c.l.b16 %v670
        %v711 = vpack.c.b16 %v710, %v710
        %712 = vrot.lane.b32.xlu0 %v711, 104
        %v713 = vpop.permute.xlu0 %712
        %v715 = vsel %vm488, %v708, 0
        %v718 = vsel %vm504, %v713, 0
        %720 = vmatpush.bf16.msra.mxu0 0
        %721 = vmatpush.bf16.msra.mxu0 0
        %722 = vmatpush.bf16.msra.mxu0 0
        %723 = vmatpush.bf16.msra.mxu0 0
        %724 = vmatpush.bf16.msra.mxu0 0
        %725 = vmatpush.bf16.msra.mxu0 0
        %726 = vmatpush.bf16.msra.mxu0 0
        %727 = vmatpush.bf16.msra.mxu0 %v718
        %728 = vmatmul.bf16.gmra.mxu0 %v715
        %v729 = vpop.f32.mrf.mxu0
        %v730 = vadd.f32 0.0, %v729
        %v731 = vpop.f32.mrf.mxu0
        %732 = vdwg.mxu0
        %v733 = vpack.c.bf16 %v730, %v730
        %735 = vrot.lane.b32.xlu0 %v733, 24
        %v736 = vpop.permute.xlu0 %735
        %vm738 = vcmask 257216
        %739 = vst.msk [vmem:[#allocation3] sm:$0xf] %vm738, %v736
        %v740 = vld [vmem:[#allocation3] sm:$0xf]
        %v741 = vld [vmem:[#allocation10] sm:$0xf]
        %v742 = vld [vmem:[#allocation10 + $0x4] sm:$0xf]
        %v743 = vld [vmem:[#allocation10 + $0x8] sm:$0xf]
        %v744 = vld [vmem:[#allocation10 + $0xc] sm:$0xf]
        %v745 = vld [vmem:[%s6] sm:$0x1]
        %v746 = vunpack.c.l.bf16 %v745
        %v747 = vperm.slane %v746, 0
        %v752 = vunpack.c.l.b16 %v741
        %v753 = vunpack.c.l.b16 %v742
        %v754 = vunpack.c.l.b16 %v743
        %v755 = vunpack.c.l.b16 %v744
        %v756 = vpack.c.b16 %v753, %v752
        %v757 = vpack.c.b16 %v755, %v754
        %v761 = vsel %vm441, %v740, 0
        %763 = vmatpush.bf16.msra.mxu0 0
        %764 = vmatpush.bf16.msra.mxu0 0
        %765 = vmatpush.bf16.msra.mxu0 0
        %766 = vmatpush.bf16.msra.mxu0 0
        %767 = vmatpush.bf16.msra.mxu0 0
        %768 = vmatpush.bf16.msra.mxu0 0
        %769 = vmatpush.bf16.msra.mxu0 %v757
        %770 = vmatpush.bf16.msra.mxu0 %v756
        %771 = vmatmul.bf16.gmra.mxu0 %v761
        %v772 = vpop.f32.mrf.mxu0
        %v773 = vadd.f32 %v747, %v772
        %v774 = vpop.f32.mrf.mxu0
        %775 = vdwg.mxu0
        %776 = vst.msk [vmem:[%s342] sm:$0xff] %vm441, %v773
        %s777 = sand.u32 %s198, 1
        %s778 = scalar_lea.sflag [#allocation6], %s777
        %s779 = sand.u32 %s198, 1
        %s780 = smul.addr %s779, 8
        %s781 = scalar_lea.vmem [#allocation12], %s780
        // Predicated region
        $region69: #{tpu_custom_call.1} parent=47 // pred_check
          %p782 = pneg %p208
        $region70: #{tpu_custom_call.1} parent=47 // pred_check_branch
          %784 = sbr.rel (%p782) target = $region72
        $region71: #{tpu_custom_call.1} parent=47 // pred_region
          %786 = vsyncadd %s778, 0
          %s787 = sadd.s32 %s29, %s28
          %s788 = smul.addr %s787, 8
          %s789 = scalar_lea.hbm %s7, %s788
          %s791 = sshll.u32 %s781, 4
          %s792 = int_to_ptr.vmem [resolvable:$true] %s791
          %s793 = sshll.u32 %s789, 4
          %s794 = int_to_ptr.hbm [resolvable:$true] %s793
          %796 = dma.vmem_to_hbm [thread:$0]  %s792, 128, %s794, %s778
        $region72: #{tpu_custom_call.1} parent=47 // pred_fallthru
          _
      $region48: #{tpu_custom_call.1} parent=5 // pred_fallthru
        _
      %p797 = scmp.le.s32.totalorder 2, %s19
      // Predicated region
      $region73: #{tpu_custom_call.1} parent=5 // pred_check
        %p798 = pneg %p797
      $region74: #{tpu_custom_call.1} parent=5 // pred_check_branch
        %800 = sbr.rel (%p798) target = $region76
      $region75: #{tpu_custom_call.1} parent=5 // pred_region
        %s801 = ssub.s32 %s19, 2
        // Predicated region
        $region77: #{tpu_custom_call.1} parent=75 // pred_check
          %p802 = pneg %p214
        $region78: #{tpu_custom_call.1} parent=75 // pred_check_branch
          %804 = sbr.rel (%p802) target = $region80
        $region79: #{tpu_custom_call.1} parent=75 // pred_region
          %s805 = sand.u32 %s199, 1
          %s806 = scalar_lea.sflag [#allocation6], %s805
          %s807 = sand.u32 %s199, 1
          %s808 = smul.addr %s807, 8
          %s809 = scalar_lea.vmem [#allocation12], %s808
          %811 = dma.done %s806, 128
        $region80: #{tpu_custom_call.1} parent=75 // pred_fallthru
          _
      $region76: #{tpu_custom_call.1} parent=5 // pred_fallthru
        _
    $region6: #{tpu_custom_call.1} parent=1 // loop_footer
      %s23 = sadd.s32 1, %s19
    $region7: #{tpu_custom_call.1} parent=1 // loop_footer_branch
      %18 = sbr.rel target = $region3
    $region8: #{tpu_custom_call.1} parent=1 // loop_exit
      _
    %812 = vsyncpa [#allocation5], 1
    %s813 = scalar_lea.sflag [#allocation5], 1
    %814 = vsyncpa %s813, 1
    %815 = vsyncpa [#allocation8], 1
    %816 = vsyncpa [#allocation11], 1
    %817 = vsyncpa [#allocation6], 1
    %s818 = scalar_lea.sflag [#allocation6], 1
    %819 = vsyncpa %s818, 1

// kernel: tpu_custom_call.1
$region0: #{tpu_custom_call.1}
  #allocation0 [shape = 'u32[]', space=smem, size = 0x4, offset = 0x4, fixed_abs, tag = 'smem constant byte address 0x4 - core index']
  #allocation1 [shape = 'u32[72,128]{1,0:T(1,128)}', space=vmem, size = 0x9000, scoped, tag = 'internal scratch']
  #allocation2 [shape = 'bf16[8,160]{1,0:T(8,128)(2,1)}', space=vmem, size = 0x1000, scoped, tag = 'scratch operand']
  #allocation3 [shape = 'bf16[8,32]{1,0:T(8,128)(2,1)}', space=vmem, size = 0x800, scoped, tag = 'scratch operand']
  %s0 = inlined_call_operand.hbm [shape: f32[2,8,32], index: 0, kind: input, shape index: {}]
  %s1 = inlined_call_operand.hbm [shape: bf16[32,128], index: 1, kind: input, shape index: {}]
  %s2 = inlined_call_operand.vmem [shape: bf16[1,128], index: 2, kind: input, shape index: {}]
  %s3 = inlined_call_operand.hbm [shape: bf16[32,160], index: 3, kind: input, shape index: {}]
  %s4 = inlined_call_operand.vmem [shape: bf16[1,160], index: 4, kind: input, shape index: {}]
  %s5 = inlined_call_operand.hbm [shape: bf16[32,32], index: 5, kind: input, shape index: {}]
  %s6 = inlined_call_operand.vmem [shape: bf16[1,32], index: 6, kind: input, shape index: {}]
  %s7 = inlined_call_operand.hbm [shape: f32[2,8,32], index: 7, kind: output, shape index: {}]
  %s8 = sld [smem:[#allocation0]]
  $region81: #{tpu_custom_call.1} parent=0
    _
  %s10 = ssub.s32 1, %s8
  %s11 = scalar_select 0, %s10, %s8
  $region1: #{tpu_custom_call.1} parent=0
    #allocation4 [shape = 'u8[8192]{0}', space=vmem, size = 0x2000, scoped, tag = 'input window, operand 0']
    #allocation5 [shape = 's32[2]{0}', space=sflag, size = 0x8, scoped, tag = 'scoped memory for tpu_custom_call.1']
    #allocation6 [shape = 's32[2]{0}', space=sflag, size = 0x8, scoped, tag = 'scoped memory for tpu_custom_call.1']
    #allocation7 [shape = 'u8[8192]{0}', space=vmem, size = 0x2000, scoped, tag = 'input window, operand 1, single buffered']
    #allocation8 [shape = 's32[1]{0}', space=sflag, size = 0x4, scoped, tag = 'scoped memory for tpu_custom_call.1']
    #allocation9 [shape = 'u8[16384]{0}', space=vmem, size = 0x4000, scoped, tag = 'input window, operand 3, single buffered']
    #allocation10 [shape = 'u8[8192]{0}', space=vmem, size = 0x2000, scoped, tag = 'input window, operand 5, single buffered']
    #allocation11 [shape = 's32[1]{0}', space=sflag, size = 0x4, scoped, tag = 'scoped memory for tpu_custom_call.1']
    #allocation12 [shape = 'u8[8192]{0}', space=vmem, size = 0x2000, scoped, tag = 'output window, operand 0']
    %12 = vsyncpa [#allocation5], 0
    %s13 = scalar_lea.sflag [#allocation5], 1
    %14 = vsyncpa %s13, 0
    %15 = vsyncpa [#allocation8], 0
    %16 = vsyncpa [#allocation11], 0
    %17 = vsyncpa [#allocation6], 0
    %s18 = scalar_lea.sflag [#allocation6], 1
    %19 = vsyncpa %s18, 0
    loop: start=0, step=1, limit=4
    $region2: #{tpu_custom_call.1} parent=1 // loop_pre_header
      _
    $region3: #{tpu_custom_call.1} parent=1 // loop_header
      %s21 = sphi 0, %s25
      %p22 = scmp.ge.s32.totalorder %s21, 4
      %s28 = sphi 0, %s40
      %s29 = sphi 0, %s36
      %s30 = sphi 0, %s28
      %s31 = sphi 0, %s29
      %s32 = sphi 0, %s30
      %s33 = sphi 0, %s31
      %s43 = sphi 0, %s45
      %s46 = sphi 0, %s43
      %s47 = sphi 0, %s46
      %s63 = sphi 0, %s47
      %s67 = sphi 0, %s67
      %s69 = sphi 0, %s67
      %s70 = sphi 0, %s69
      %s84 = sphi 0, %s70
      %s88 = sphi 0, %s88
      %s90 = sphi 0, %s88
      %s91 = sphi 0, %s90
      %s105 = sphi 0, %s91
      %s109 = sphi 0, %s109
      %s111 = sphi 0, %s109
      %s112 = sphi 0, %s111
      %s126 = sphi 0, %s112
      %s130 = sphi 0, %s130
      %s132 = sphi 0, %s130
      %s133 = sphi 0, %s132
      %s147 = sphi 0, %s133
      %s151 = sphi 0, %s151
      %s153 = sphi 0, %s151
      %s154 = sphi 0, %s153
      %s168 = sphi 0, %s154
      %s172 = sphi 0, %s172
      %s174 = sphi 0, %s172
      %s175 = sphi 0, %s174
      %s189 = sphi 0, %s175
      %s197 = sphi 0, %s199
      %s200 = sphi 0, %s197
      %s201 = sphi 0, %s200
      %s217 = sphi 0, %s201
    $region4: #{tpu_custom_call.1} parent=1 // loop_header_branch
      %24 = sbr.rel (%p22) target = $region8
    $region5: #{tpu_custom_call.1} parent=1 // loop_body
      %s26 = ssub.s32 %s21, 1
      %s27 = ssub.s32 %s21, 2
      %s34 = sadd.s32 1, %s29
      %p35 = scmp.ge.s32.totalorder %s34, 1
      %s36 = scalar_select %p35, 0, %s34
      %s37 = sadd.s32 1, %s28
      %s38 = scalar_select %p35, %s37, %s28
      %p39 = scmp.ge.s32.totalorder %s38, 2
      %s40 = scalar_select %p39, 0, %s38
      %s41 = ssub.s32 %s28, %s40
      %p42 = scmp.eq.s32.totalorder %s41, 0
      %s44 = sadd.s32 %s43, 1
      %s45 = scalar_select %p42, %s43, %s44
      %p48 = pneg %p42
      %p49 = scmp.eq.s32.totalorder %s21, 1
      %p50 = por %p48, %p49
      %p51 = scmp.ne.s32.totalorder %s43, %s46
      %p52 = scmp.eq.s32.totalorder %s21, 0
      %p53 = por %p51, %p52
      %p54 = scmp.ne.s32.totalorder %s43, %s46
      %p55 = scmp.eq.s32.totalorder %s26, 1
      %p56 = por %p54, %p55
      %p57 = scmp.ne.s32.totalorder %s46, %s47
      %p58 = scmp.eq.s32.totalorder %s26, 0
      %p59 = por %p57, %p58
      %p60 = scmp.ne.s32.totalorder %s46, %s47
      %p61 = scmp.eq.s32.totalorder %s27, 1
      %p62 = por %p60, %p61
      %p64 = scmp.ne.s32.totalorder %s47, %s63
      %p65 = scmp.eq.s32.totalorder %s27, 0
      %p66 = por %p64, %p65
      %s68 = sadd.s32 %s67, 1
      %p71 = scmp.eq.s32.totalorder %s21, 1
      %p72 = scmp.ne.s32.totalorder %s67, %s69
      %p73 = scmp.eq.s32.totalorder %s21, 0
      %p74 = por %p72, %p73
      %p75 = scmp.ne.s32.totalorder %s67, %s69
      %p76 = scmp.eq.s32.totalorder %s26, 1
      %p77 = por %p75, %p76
      %p78 = scmp.ne.s32.totalorder %s69, %s70
      %p79 = scmp.eq.s32.totalorder %s26, 0
      %p80 = por %p78, %p79
      %p81 = scmp.ne.s32.totalorder %s69, %s70
      %p82 = scmp.eq.s32.totalorder %s27, 1
      %p83 = por %p81, %p82
      %p85 = scmp.ne.s32.totalorder %s70, %s84
      %p86 = scmp.eq.s32.totalorder %s27, 0
      %p87 = por %p85, %p86
      %s89 = sadd.s32 %s88, 1
      %p92 = scmp.eq.s32.totalorder %s21, 1
      %p93 = scmp.ne.s32.totalorder %s88, %s90
      %p94 = scmp.eq.s32.totalorder %s21, 0
      %p95 = por %p93, %p94
      %p96 = scmp.ne.s32.totalorder %s88, %s90
      %p97 = scmp.eq.s32.totalorder %s26, 1
      %p98 = por %p96, %p97
      %p99 = scmp.ne.s32.totalorder %s90, %s91
      %p100 = scmp.eq.s32.totalorder %s26, 0
      %p101 = por %p99, %p100
      %p102 = scmp.ne.s32.totalorder %s90, %s91
      %p103 = scmp.eq.s32.totalorder %s27, 1
      %p104 = por %p102, %p103
      %p106 = scmp.ne.s32.totalorder %s91, %s105
      %p107 = scmp.eq.s32.totalorder %s27, 0
      %p108 = por %p106, %p107
      %s110 = sadd.s32 %s109, 1
      %p113 = scmp.eq.s32.totalorder %s21, 1
      %p114 = scmp.ne.s32.totalorder %s109, %s111
      %p115 = scmp.eq.s32.totalorder %s21, 0
      %p116 = por %p114, %p115
      %p117 = scmp.ne.s32.totalorder %s109, %s111
      %p118 = scmp.eq.s32.totalorder %s26, 1
      %p119 = por %p117, %p118
      %p120 = scmp.ne.s32.totalorder %s111, %s112
      %p121 = scmp.eq.s32.totalorder %s26, 0
      %p122 = por %p120, %p121
      %p123 = scmp.ne.s32.totalorder %s111, %s112
      %p124 = scmp.eq.s32.totalorder %s27, 1
      %p125 = por %p123, %p124
      %p127 = scmp.ne.s32.totalorder %s112, %s126
      %p128 = scmp.eq.s32.totalorder %s27, 0
      %p129 = por %p127, %p128
      %s131 = sadd.s32 %s130, 1
      %p134 = scmp.eq.s32.totalorder %s21, 1
      %p135 = scmp.ne.s32.totalorder %s130, %s132
      %p136 = scmp.eq.s32.totalorder %s21, 0
      %p137 = por %p135, %p136
      %p138 = scmp.ne.s32.totalorder %s130, %s132
      %p139 = scmp.eq.s32.totalorder %s26, 1
      %p140 = por %p138, %p139
      %p141 = scmp.ne.s32.totalorder %s132, %s133
      %p142 = scmp.eq.s32.totalorder %s26, 0
      %p143 = por %p141, %p142
      %p144 = scmp.ne.s32.totalorder %s132, %s133
      %p145 = scmp.eq.s32.totalorder %s27, 1
      %p146 = por %p144, %p145
      %p148 = scmp.ne.s32.totalorder %s133, %s147
      %p149 = scmp.eq.s32.totalorder %s27, 0
      %p150 = por %p148, %p149
      %s152 = sadd.s32 %s151, 1
      %p155 = scmp.eq.s32.totalorder %s21, 1
      %p156 = scmp.ne.s32.totalorder %s151, %s153
      %p157 = scmp.eq.s32.totalorder %s21, 0
      %p158 = por %p156, %p157
      %p159 = scmp.ne.s32.totalorder %s151, %s153
      %p160 = scmp.eq.s32.totalorder %s26, 1
      %p161 = por %p159, %p160
      %p162 = scmp.ne.s32.totalorder %s153, %s154
      %p163 = scmp.eq.s32.totalorder %s26, 0
      %p164 = por %p162, %p163
      %p165 = scmp.ne.s32.totalorder %s153, %s154
      %p166 = scmp.eq.s32.totalorder %s27, 1
      %p167 = por %p165, %p166
      %p169 = scmp.ne.s32.totalorder %s154, %s168
      %p170 = scmp.eq.s32.totalorder %s27, 0
      %p171 = por %p169, %p170
      %s173 = sadd.s32 %s172, 1
      %p176 = scmp.eq.s32.totalorder %s21, 1
      %p177 = scmp.ne.s32.totalorder %s172, %s174
      %p178 = scmp.eq.s32.totalorder %s21, 0
      %p179 = por %p177, %p178
      %p180 = scmp.ne.s32.totalorder %s172, %s174
      %p181 = scmp.eq.s32.totalorder %s26, 1
      %p182 = por %p180, %p181
      %p183 = scmp.ne.s32.totalorder %s174, %s175
      %p184 = scmp.eq.s32.totalorder %s26, 0
      %p185 = por %p183, %p184
      %p186 = scmp.ne.s32.totalorder %s174, %s175
      %p187 = scmp.eq.s32.totalorder %s27, 1
      %p188 = por %p186, %p187
      %p190 = scmp.ne.s32.totalorder %s175, %s189
      %p191 = scmp.eq.s32.totalorder %s27, 0
      %p192 = por %p190, %p191
      %s193 = ssub.s32 %s28, %s40
      %s194 = ssub.s32 %s29, %s36
      %s195 = sor.u32 %s193, %s194
      %p196 = scmp.eq.s32.totalorder %s195, 0
      %s198 = sadd.s32 %s197, 1
      %s199 = scalar_select %p196, %s197, %s198
      %p202 = pneg %p196
      %p203 = scmp.eq.s32.totalorder %s21, 1
      %p204 = por %p202, %p203
      %p205 = scmp.ne.s32.totalorder %s197, %s200
      %p206 = scmp.eq.s32.totalorder %s21, 0
      %p207 = por %p205, %p206
      %p208 = scmp.ne.s32.totalorder %s197, %s200
      %p209 = scmp.eq.s32.totalorder %s26, 1
      %p210 = por %p208, %p209
      %p211 = scmp.ne.s32.totalorder %s200, %s201
      %p212 = scmp.eq.s32.totalorder %s26, 0
      %p213 = por %p211, %p212
      %p214 = scmp.ne.s32.totalorder %s200, %s201
      %p215 = scmp.eq.s32.totalorder %s27, 1
      %p216 = por %p214, %p215
      %p218 = scmp.ne.s32.totalorder %s201, %s217
      %p219 = scmp.eq.s32.totalorder %s27, 0
      %p220 = por %p218, %p219
      %p221 = scmp.le.s32.totalorder 1, %s21
      %p222 = scmp.lt.s32.totalorder %s21, 3
      %p223 = pnand %p221, %p222
      %p224 = pneg %p223
      // Predicated region
      $region9: #{tpu_custom_call.1} parent=5 // pred_check
        _
      $region10: #{tpu_custom_call.1} parent=5 // pred_check_branch
        %226 = sbr.rel (%p223) target = $region12
      $region11: #{tpu_custom_call.1} parent=5 // pred_region
        %s227 = ssub.s32 %s21, 1
        // Predicated region
        $region13: #{tpu_custom_call.1} parent=11 // pred_check
          %p228 = pneg %p80
        $region14: #{tpu_custom_call.1} parent=11 // pred_check_branch
          %230 = sbr.rel (%p228) target = $region16
        $region15: #{tpu_custom_call.1} parent=11 // pred_region
          %232 = vsyncadd [#allocation8], 0
          %s233 = sshll.u32 %s1, 4
          %s234 = int_to_ptr.hbm [resolvable:$true] %s233
          %s235 = sshll.u32 [#allocation7], 4
          %s236 = int_to_ptr.vmem [resolvable:$true] %s235
          %241 = dma.hbm_to_vmem [thread:$0]  %s234, 256, %s236, [#allocation8], 64, 64, 4
        $region16: #{tpu_custom_call.1} parent=11 // pred_fallthru
          _
        // Predicated region
        $region17: #{tpu_custom_call.1} parent=11 // pred_check
          %p242 = pneg %p101
        $region18: #{tpu_custom_call.1} parent=11 // pred_check_branch
          %244 = sbr.rel (%p242) target = $region20
        $region19: #{tpu_custom_call.1} parent=11 // pred_region
          _
        $region20: #{tpu_custom_call.1} parent=11 // pred_fallthru
          _
        // Predicated region
        $region21: #{tpu_custom_call.1} parent=11 // pred_check
          %p245 = pneg %p122
        $region22: #{tpu_custom_call.1} parent=11 // pred_check_branch
          %247 = sbr.rel (%p245) target = $region24
        $region23: #{tpu_custom_call.1} parent=11 // pred_region
          %249 = vsyncadd [#allocation8], 0
          %s250 = sshll.u32 %s3, 4
          %s251 = int_to_ptr.hbm [resolvable:$true] %s250
          %s252 = sshll.u32 [#allocation9], 4
          %s253 = int_to_ptr.vmem [resolvable:$true] %s252
          %258 = dma.hbm_to_vmem [thread:$0]  %s251, 512, %s253, [#allocation8], 128, 128, 8
        $region24: #{tpu_custom_call.1} parent=11 // pred_fallthru
          _
        // Predicated region
        $region25: #{tpu_custom_call.1} parent=11 // pred_check
          %p259 = pneg %p143
        $region26: #{tpu_custom_call.1} parent=11 // pred_check_branch
          %261 = sbr.rel (%p259) target = $region28
        $region27: #{tpu_custom_call.1} parent=11 // pred_region
          _
        $region28: #{tpu_custom_call.1} parent=11 // pred_fallthru
          _
        // Predicated region
        $region29: #{tpu_custom_call.1} parent=11 // pred_check
          %p262 = pneg %p164
        $region30: #{tpu_custom_call.1} parent=11 // pred_check_branch
          %264 = sbr.rel (%p262) target = $region32
        $region31: #{tpu_custom_call.1} parent=11 // pred_region
          %266 = vsyncadd [#allocation11], 0
          %s267 = sshll.u32 %s5, 4
          %s268 = int_to_ptr.hbm [resolvable:$true] %s267
          %s269 = sshll.u32 [#allocation10], 4
          %s270 = int_to_ptr.vmem [resolvable:$true] %s269
          %275 = dma.hbm_to_vmem [thread:$0]  %s268, 256, %s270, [#allocation11], 64, 64, 4
        $region32: #{tpu_custom_call.1} parent=11 // pred_fallthru
          _
        // Predicated region
        $region33: #{tpu_custom_call.1} parent=11 // pred_check
          %p276 = pneg %p185
        $region34: #{tpu_custom_call.1} parent=11 // pred_check_branch
          %278 = sbr.rel (%p276) target = $region36
        $region35: #{tpu_custom_call.1} parent=11 // pred_region
          _
        $region36: #{tpu_custom_call.1} parent=11 // pred_fallthru
          _
      $region12: #{tpu_custom_call.1} parent=5 // pred_fallthru
        _
      %p279 = scmp.lt.s32.totalorder %s21, 2
      // Predicated region
      $region37: #{tpu_custom_call.1} parent=5 // pred_check
        %p280 = pneg %p279
      $region38: #{tpu_custom_call.1} parent=5 // pred_check_branch
        %282 = sbr.rel (%p280) target = $region40
      $region39: #{tpu_custom_call.1} parent=5 // pred_region
        // Predicated region
        $region41: #{tpu_custom_call.1} parent=39 // pred_check
          %p283 = pneg %p53
        $region42: #{tpu_custom_call.1} parent=39 // pred_check_branch
          %285 = sbr.rel (%p283) target = $region44
        $region43: #{tpu_custom_call.1} parent=39 // pred_region
          %s286 = sand.u32 %s43, 1
          %s287 = scalar_lea.sflag [#allocation5], %s286
          %s288 = sand.u32 %s43, 1
          %s289 = smul.addr %s288, 8
          %s290 = scalar_lea.vmem [#allocation4], %s289
          %292 = vsyncadd %s287, 0
          %s293 = smul.addr %s28, 8
          %s294 = scalar_lea.hbm %s0, %s293
          %s296 = sshll.u32 %s294, 4
          %s297 = int_to_ptr.hbm [resolvable:$true] %s296
          %s298 = sshll.u32 %s290, 4
          %s299 = int_to_ptr.vmem [resolvable:$true] %s298
          %301 = dma.hbm_to_vmem [thread:$0]  %s297, 128, %s299, %s287
        $region44: #{tpu_custom_call.1} parent=39 // pred_fallthru
          _
      $region40: #{tpu_custom_call.1} parent=5 // pred_fallthru
        _
      %p302 = scmp.le.s32.totalorder 1, %s21
      %p303 = scmp.lt.s32.totalorder %s21, 3
      %p304 = pnand %p302, %p303
      %p305 = pneg %p304
      // Predicated region
      $region45: #{tpu_custom_call.1} parent=5 // pred_check
        _
      $region46: #{tpu_custom_call.1} parent=5 // pred_check_branch
        %307 = sbr.rel (%p304) target = $region48
      $region47: #{tpu_custom_call.1} parent=5 // pred_region
        %s308 = ssub.s32 %s21, 1
        %s309 = sand.u32 %s46, 1
        %s310 = scalar_lea.sflag [#allocation5], %s309
        %s311 = sand.u32 %s46, 1
        %s312 = smul.addr %s311, 8
        %s313 = scalar_lea.vmem [#allocation4], %s312
        // Predicated region
        $region49: #{tpu_custom_call.1} parent=47 // pred_check
          %p314 = pneg %p59
        $region50: #{tpu_custom_call.1} parent=47 // pred_check_branch
          %316 = sbr.rel (%p314) target = $region52
        $region51: #{tpu_custom_call.1} parent=47 // pred_region
          %318 = dma.done %s310, 128
        $region52: #{tpu_custom_call.1} parent=47 // pred_fallthru
          _
        // Predicated region
        $region53: #{tpu_custom_call.1} parent=47 // pred_check
          %p319 = pneg %p80
        $region54: #{tpu_custom_call.1} parent=47 // pred_check_branch
          %321 = sbr.rel (%p319) target = $region56
        $region55: #{tpu_custom_call.1} parent=47 // pred_region
          %323 = dma.done [#allocation8], 256
        $region56: #{tpu_custom_call.1} parent=47 // pred_fallthru
          _
        // Predicated region
        $region57: #{tpu_custom_call.1} parent=47 // pred_check
          %p324 = pneg %p122
        $region58: #{tpu_custom_call.1} parent=47 // pred_check_branch
          %326 = sbr.rel (%p324) target = $region60
        $region59: #{tpu_custom_call.1} parent=47 // pred_region
          %328 = dma.done [#allocation8], 512
        $region60: #{tpu_custom_call.1} parent=47 // pred_fallthru
          _
        // Predicated region
        $region61: #{tpu_custom_call.1} parent=47 // pred_check
          %p329 = pneg %p164
        $region62: #{tpu_custom_call.1} parent=47 // pred_check_branch
          %331 = sbr.rel (%p329) target = $region64
        $region63: #{tpu_custom_call.1} parent=47 // pred_region
          %333 = dma.done [#allocation11], 256
        $region64: #{tpu_custom_call.1} parent=47 // pred_fallthru
          _
        %s334 = sand.u32 %s46, 1
        %s335 = scalar_lea.sflag [#allocation5], %s334
        %s336 = sand.u32 %s46, 1
        %s337 = smul.addr %s336, 8
        %s338 = scalar_lea.vmem [#allocation4], %s337
        %p339 = pneg %p59
        %p340 = pneg %p56
        %p341 = pneg %p80
        %p342 = pneg %p77
        %p343 = pneg %p101
        %p344 = pneg %p98
        %p345 = pneg %p122
        %p346 = pneg %p119
        %p347 = pneg %p143
        %p348 = pneg %p140
        %p349 = pneg %p164
        %p350 = pneg %p161
        %p351 = pneg %p185
        %p352 = pneg %p182
        %p353 = pneg %p213
        %p354 = pneg %p210
        %s355 = sand.u32 %s200, 1
        %s356 = scalar_lea.sflag [#allocation6], %s355
        %s357 = sand.u32 %s200, 1
        %s358 = smul.addr %s357, 8
        %s359 = scalar_lea.vmem [#allocation12], %s358
        %p361 = scmp.eq.s32.totalorder %s31, 0
        // Predicated region
        $region65: #{tpu_custom_call.1} parent=47 // pred_check
          %p362 = pneg %p361
        $region66: #{tpu_custom_call.1} parent=47 // pred_check_branch
          %364 = sbr.rel (%p362) target = $region68
        $region67: #{tpu_custom_call.1} parent=47 // pred_region
          %v365 = vld [vmem:[%s313] sm:$0xff]
          %v366 = vpack.c.bf16 %v365, %v365
          %v367 = vld [vmem:[#allocation9] sm:$0xff]
          %v368 = vld [vmem:[#allocation9 + $0x8] sm:$0xff]
          %v369 = vld [vmem:[#allocation9 + $0x10] sm:$0xff]
          %v370 = vld [vmem:[#allocation9 + $0x18] sm:$0xff]
          %v371 = vld [vmem:[%s4] sm:$0x3]
          %v372 = vunpack.c.l.bf16 %v371
          %v374 = vperm.slane %v372, 0
          %v375 = vperm.slane %v372, 2
          %v378 = vperm.slane %v374, 0
          %v379 = vperm.slane %v375, 0
          %v384 = vunpack.c.l.b16 %v367
          %v385 = vunpack.c.h.b16 %v367
          %v386 = vunpack.c.l.b16 %v368
          %v387 = vunpack.c.h.b16 %v368
          %v388 = vunpack.c.l.b16 %v369
          %v389 = vunpack.c.h.b16 %v369
          %v390 = vunpack.c.l.b16 %v370
          %v391 = vunpack.c.h.b16 %v370
          %v392 = vpack.c.b16 %v386, %v384
          %v393 = vpack.c.b16 %v387, %v385
          %v394 = vpack.c.b16 %v390, %v388
          %v395 = vpack.c.b16 %v391, %v389
          %vm400 = vcmask 261120
          %v402 = vsel %vm400, %v366, 0
          %404 = vmatpush.bf16.msra.mxu0 0
          %405 = vmatpush.bf16.msra.mxu0 0
          %406 = vmatpush.bf16.msra.mxu0 0
          %407 = vmatpush.bf16.msra.mxu0 0
          %408 = vmatpush.bf16.msra.mxu0 0
          %409 = vmatpush.bf16.msra.mxu0 0
          %410 = vmatpush.bf16.msra.mxu0 %v394
          %411 = vmatpush.bf16.msra.mxu0 %v392
          %412 = vmatmul.bf16.gmra.mxu0 %v402
          %v413 = vpop.f32.mrf.mxu0
          %v414 = vadd.f32 %v378, %v413
          %v415 = vpop.f32.mrf.mxu0
          %416 = vdwg.mxu0
          %417 = vmatpush.bf16.msra.mxu0 0
          %418 = vmatpush.bf16.msra.mxu0 0
          %419 = vmatpush.bf16.msra.mxu0 0
          %420 = vmatpush.bf16.msra.mxu0 0
          %421 = vmatpush.bf16.msra.mxu0 0
          %422 = vmatpush.bf16.msra.mxu0 0
          %423 = vmatpush.bf16.msra.mxu0 %v395
          %424 = vmatpush.bf16.msra.mxu0 %v393
          %425 = vmatmul.bf16.gmra.mxu0 %v402
          %v426 = vpop.f32.mrf.mxu0
          %v427 = vadd.f32 %v379, %v426
          %v428 = vpop.f32.mrf.mxu0
          %429 = vdwg.mxu0
          %v430 = vpack.c.bf16 %v427, %v414
          %vm431 = vcmask 1043456
          %vm432 = vcmask 261124
          %vm433 = vmor %vm432, %vm431
          %434 = vst.msk [vmem:[#allocation2] sm:$0xff] %vm433, %v430
        $region68: #{tpu_custom_call.1} parent=47 // pred_fallthru
          _
        %s435 = smul.u32 %s31, 8
        %s436 = scalar_lea.vmem %s313, %s435 [#allocation4]
        %v437 = vld [vmem:[%s436] sm:$0xff]
        %v438 = vpack.c.bf16 %v437, %v437
        %v439 = vld [vmem:[#allocation7] sm:$0xf]
        %v440 = vld [vmem:[#allocation7 + $0x4] sm:$0xf]
        %v441 = vld [vmem:[#allocation7 + $0x8] sm:$0xf]
        %v442 = vld [vmem:[#allocation7 + $0xc] sm:$0xf]
        %v443 = vld [vmem:[%s2] sm:$0x1]
        %v444 = vunpack.c.l.bf16 %v443
        %v445 = vperm.slane %v444, 0
        %v450 = vunpack.c.l.b16 %v439
        %v451 = vunpack.c.l.b16 %v440
        %v452 = vunpack.c.l.b16 %v441
        %v453 = vunpack.c.l.b16 %v442
        %v454 = vpack.c.b16 %v451, %v450
        %v455 = vpack.c.b16 %v453, %v452
        %vm458 = vcmask 261120
        %v460 = vsel %vm458, %v438, 0
        %462 = vmatpush.bf16.msra.mxu0 0
        %463 = vmatpush.bf16.msra.mxu0 0
        %464 = vmatpush.bf16.msra.mxu0 0
        %465 = vmatpush.bf16.msra.mxu0 0
        %466 = vmatpush.bf16.msra.mxu0 0
        %467 = vmatpush.bf16.msra.mxu0 0
        %468 = vmatpush.bf16.msra.mxu0 %v455
        %469 = vmatpush.bf16.msra.mxu0 %v454
        %470 = vmatmul.bf16.gmra.mxu0 %v460
        %v471 = vpop.f32.mrf.mxu0
        %v472 = vadd.f32 %v445, %v471
        %v473 = vpop.f32.mrf.mxu0
        %474 = vdwg.mxu0
        %v475 = vpack.c.bf16 %v472, %v472
        %v476 = vlaneseq
        %v477 = vshrl.u32 %v476, 7
        %v478 = vstv %s435
        %v479 = vadd.s32 %v478, %v477
        %v480 = vlaneseq
        %v481 = vand.u32 %v480, 127
        %vm482 = vcmp.le.s32.totalorder %v481, %v479
        %v483 = vsel %vm482, 0.0, -1e+30
        %v484 = vld [vmem:[#allocation2] sm:$0xf]
        %v485 = vld [vmem:[#allocation2 + $0x4] sm:$0xf]
        %v487 = vsel %vm458, %v475, 0
        %v490 = vsel %vm458, %v484, 0
        %492 = vmatpush.bf16.xpose.msra.mxu0 0
        %493 = vmatpush.bf16.xpose.msra.mxu0 0
        %494 = vmatpush.bf16.xpose.msra.mxu0 0
        %495 = vmatpush.bf16.xpose.msra.mxu0 0
        %496 = vmatpush.bf16.xpose.msra.mxu0 0
        %497 = vmatpush.bf16.xpose.msra.mxu0 0
        %498 = vmatpush.bf16.xpose.msra.mxu0 0
        %499 = vmatpush.bf16.xpose.msra.mxu0 %v490
        %500 = vmatmul.bf16.gmra.mxu0 %v487
        %v501 = vpop.f32.mrf.mxu0
        %v502 = vadd.f32 %v483, %v501
        %v503 = vpop.f32.mrf.mxu0
        %504 = vdwg.mxu0
        %vm505 = vcmask 64512
        %v506 = vsel %vm505, %v502, -inf
        %507 = vmax.xlane.f32.xlu0 %v506
        %v508 = vpop.xlane.xlu0 %507
        %v509 = vsub.f32 %v502, %v508
        %v510 = vmul.f32 %v509, 1.442695
        %v511 = vpow.pop %v510
        %v512 = vsel %vm505, %v511, 0.0
        %513 = vadd.xlane.f32.xlu0 %v512
        %v514 = vpop.xlane.xlu0 %513
        %v515 = vrcp.pop %v514
        %v516 = vmul.f32 %v511, %v515
        %v517 = vpack.c.bf16 %v516, %v516
        %v519 = vsel %vm505, %v517, 0
        %vm521 = vcmask 1043456
        %v523 = vsel %vm521, %v485, 0
        %525 = vmatpush.bf16.msra.mxu0 0
        %526 = vmatpush.bf16.msra.mxu0 0
        %527 = vmatpush.bf16.msra.mxu0 0
        %528 = vmatpush.bf16.msra.mxu0 0
        %529 = vmatpush.bf16.msra.mxu0 0
        %530 = vmatpush.bf16.msra.mxu0 0
        %531 = vmatpush.bf16.msra.mxu0 0
        %532 = vmatpush.bf16.msra.mxu0 %v523
        %533 = vmatmul.bf16.gmra.mxu0 %v519
        %v534 = vpop.f32.mrf.mxu0
        %v535 = vadd.f32 0.0, %v534
        %v536 = vpop.f32.mrf.mxu0
        %537 = vdwg.mxu0
        %v538 = vpack.c.bf16 %v535, %v535
        %vm539 = vcmask 60416
        %540 = vst.msk [vmem:[#allocation3] sm:$0xf] %vm539, %v538
        %v541 = vld [vmem:[#allocation2] sm:$0xf]
        %v542 = vld [vmem:[#allocation2 + $0x4] sm:$0xf]
        %v544 = vunpack.c.l.b16 %v475
        %v545 = vpack.c.b16 %v544, %v544
        %546 = vrot.lane.b32.xlu0 %v545, 96
        %v547 = vpop.permute.xlu0 %546
        %v549 = vunpack.c.l.b16 %v541
        %v550 = vpack.c.b16 %v549, %v549
        %551 = vrot.lane.b32.xlu0 %v550, 96
        %v552 = vpop.permute.xlu0 %551
        %v554 = vsel %vm458, %v547, 0
        %v557 = vsel %vm458, %v552, 0
        %559 = vmatpush.bf16.xpose.msra.mxu0 0
        %560 = vmatpush.bf16.xpose.msra.mxu0 0
        %561 = vmatpush.bf16.xpose.msra.mxu0 0
        %562 = vmatpush.bf16.xpose.msra.mxu0 0
        %563 = vmatpush.bf16.xpose.msra.mxu0 0
        %564 = vmatpush.bf16.xpose.msra.mxu0 0
        %565 = vmatpush.bf16.xpose.msra.mxu0 0
        %566 = vmatpush.bf16.xpose.msra.mxu0 %v557
        %567 = vmatmul.bf16.gmra.mxu0 %v554
        %v568 = vpop.f32.mrf.mxu0
        %v569 = vadd.f32 %v483, %v568
        %v570 = vpop.f32.mrf.mxu0
        %571 = vdwg.mxu0
        %v572 = vsel %vm505, %v569, -inf
        %573 = vmax.xlane.f32.xlu0 %v572
        %v574 = vpop.xlane.xlu0 %573
        %v575 = vsub.f32 %v569, %v574
        %v576 = vmul.f32 %v575, 1.442695
        %v577 = vpow.pop %v576
        %v578 = vsel %vm505, %v577, 0.0
        %579 = vadd.xlane.f32.xlu0 %v578
        %v580 = vpop.xlane.xlu0 %579
        %v581 = vrcp.pop %v580
        %v582 = vmul.f32 %v577, %v581
        %v583 = vpack.c.bf16 %v582, %v582
        %v585 = vunpack.c.l.b16 %v542
        %v586 = vpack.c.b16 %v585, %v585
        %587 = vrot.lane.b32.xlu0 %v586, 120
        %v588 = vpop.permute.xlu0 %587
        %v590 = vsel %vm505, %v583, 0
        %v593 = vsel %vm521, %v588, 0
        %595 = vmatpush.bf16.msra.mxu0 0
        %596 = vmatpush.bf16.msra.mxu0 0
        %597 = vmatpush.bf16.msra.mxu0 0
        %598 = vmatpush.bf16.msra.mxu0 0
        %599 = vmatpush.bf16.msra.mxu0 0
        %600 = vmatpush.bf16.msra.mxu0 0
        %601 = vmatpush.bf16.msra.mxu0 0
        %602 = vmatpush.bf16.msra.mxu0 %v593
        %603 = vmatmul.bf16.gmra.mxu0 %v590
        %v604 = vpop.f32.mrf.mxu0
        %v605 = vadd.f32 0.0, %v604
        %v606 = vpop.f32.mrf.mxu0
        %607 = vdwg.mxu0
        %v608 = vpack.c.bf16 %v605, %v605
        %610 = vrot.lane.b32.xlu0 %v608, 8
        %v611 = vpop.permute.xlu0 %610
        %vm613 = vcmask 126016
        %614 = vst.msk [vmem:[#allocation3] sm:$0xf] %vm613, %v611
        %v615 = vld [vmem:[#allocation2] sm:$0xf]
        %v616 = vld [vmem:[#allocation2 + $0x4] sm:$0xf]
        %617 = vrot.lane.b32.xlu0 %v545, 64
        %v618 = vpop.permute.xlu0 %617
        %v620 = vunpack.c.l.b16 %v615
        %v621 = vpack.c.b16 %v620, %v620
        %622 = vrot.lane.b32.xlu0 %v621, 64
        %v623 = vpop.permute.xlu0 %622
        %v625 = vsel %vm458, %v618, 0
        %v628 = vsel %vm458, %v623, 0
        %630 = vmatpush.bf16.xpose.msra.mxu0 0
        %631 = vmatpush.bf16.xpose.msra.mxu0 0
        %632 = vmatpush.bf16.xpose.msra.mxu0 0
        %633 = vmatpush.bf16.xpose.msra.mxu0 0
        %634 = vmatpush.bf16.xpose.msra.mxu0 0
        %635 = vmatpush.bf16.xpose.msra.mxu0 0
        %636 = vmatpush.bf16.xpose.msra.mxu0 0
        %637 = vmatpush.bf16.xpose.msra.mxu0 %v628
        %638 = vmatmul.bf16.gmra.mxu0 %v625
        %v639 = vpop.f32.mrf.mxu0
        %v640 = vadd.f32 %v483, %v639
        %v641 = vpop.f32.mrf.mxu0
        %642 = vdwg.mxu0
        %v643 = vsel %vm505, %v640, -inf
        %644 = vmax.xlane.f32.xlu0 %v643
        %v645 = vpop.xlane.xlu0 %644
        %v646 = vsub.f32 %v640, %v645
        %v647 = vmul.f32 %v646, 1.442695
        %v648 = vpow.pop %v647
        %v649 = vsel %vm505, %v648, 0.0
        %650 = vadd.xlane.f32.xlu0 %v649
        %v651 = vpop.xlane.xlu0 %650
        %v652 = vrcp.pop %v651
        %v653 = vmul.f32 %v648, %v652
        %v654 = vpack.c.bf16 %v653, %v653
        %v656 = vunpack.c.l.b16 %v616
        %v657 = vpack.c.b16 %v656, %v656
        %658 = vrot.lane.b32.xlu0 %v657, 112
        %v659 = vpop.permute.xlu0 %658
        %v661 = vsel %vm505, %v654, 0
        %v664 = vsel %vm521, %v659, 0
        %666 = vmatpush.bf16.msra.mxu0 0
        %667 = vmatpush.bf16.msra.mxu0 0
        %668 = vmatpush.bf16.msra.mxu0 0
        %669 = vmatpush.bf16.msra.mxu0 0
        %670 = vmatpush.bf16.msra.mxu0 0
        %671 = vmatpush.bf16.msra.mxu0 0
        %672 = vmatpush.bf16.msra.mxu0 0
        %673 = vmatpush.bf16.msra.mxu0 %v664
        %674 = vmatmul.bf16.gmra.mxu0 %v661
        %v675 = vpop.f32.mrf.mxu0
        %v676 = vadd.f32 0.0, %v675
        %v677 = vpop.f32.mrf.mxu0
        %678 = vdwg.mxu0
        %v679 = vpack.c.bf16 %v676, %v676
        %681 = vrot.lane.b32.xlu0 %v679, 16
        %v682 = vpop.permute.xlu0 %681
        %vm684 = vcmask 191616
        %685 = vst.msk [vmem:[#allocation3] sm:$0xf] %vm684, %v682
        %v686 = vld [vmem:[#allocation2] sm:$0xf]
        %v687 = vld [vmem:[#allocation2 + $0x4] sm:$0xf]
        %688 = vrot.lane.b32.xlu0 %v545, 32
        %v689 = vpop.permute.xlu0 %688
        %v691 = vunpack.c.l.b16 %v686
        %v692 = vpack.c.b16 %v691, %v691
        %693 = vrot.lane.b32.xlu0 %v692, 32
        %v694 = vpop.permute.xlu0 %693
        %v696 = vsel %vm458, %v689, 0
        %v699 = vsel %vm458, %v694, 0
        %701 = vmatpush.bf16.xpose.msra.mxu0 0
        %702 = vmatpush.bf16.xpose.msra.mxu0 0
        %703 = vmatpush.bf16.xpose.msra.mxu0 0
        %704 = vmatpush.bf16.xpose.msra.mxu0 0
        %705 = vmatpush.bf16.xpose.msra.mxu0 0
        %706 = vmatpush.bf16.xpose.msra.mxu0 0
        %707 = vmatpush.bf16.xpose.msra.mxu0 0
        %708 = vmatpush.bf16.xpose.msra.mxu0 %v699
        %709 = vmatmul.bf16.gmra.mxu0 %v696
        %v710 = vpop.f32.mrf.mxu0
        %v711 = vadd.f32 %v483, %v710
        %v712 = vpop.f32.mrf.mxu0
        %713 = vdwg.mxu0
        %v714 = vsel %vm505, %v711, -inf
        %715 = vmax.xlane.f32.xlu0 %v714
        %v716 = vpop.xlane.xlu0 %715
        %v717 = vsub.f32 %v711, %v716
        %v718 = vmul.f32 %v717, 1.442695
        %v719 = vpow.pop %v718
        %v720 = vsel %vm505, %v719, 0.0
        %721 = vadd.xlane.f32.xlu0 %v720
        %v722 = vpop.xlane.xlu0 %721
        %v723 = vrcp.pop %v722
        %v724 = vmul.f32 %v719, %v723
        %v725 = vpack.c.bf16 %v724, %v724
        %v727 = vunpack.c.l.b16 %v687
        %v728 = vpack.c.b16 %v727, %v727
        %729 = vrot.lane.b32.xlu0 %v728, 104
        %v730 = vpop.permute.xlu0 %729
        %v732 = vsel %vm505, %v725, 0
        %v735 = vsel %vm521, %v730, 0
        %737 = vmatpush.bf16.msra.mxu0 0
        %738 = vmatpush.bf16.msra.mxu0 0
        %739 = vmatpush.bf16.msra.mxu0 0
        %740 = vmatpush.bf16.msra.mxu0 0
        %741 = vmatpush.bf16.msra.mxu0 0
        %742 = vmatpush.bf16.msra.mxu0 0
        %743 = vmatpush.bf16.msra.mxu0 0
        %744 = vmatpush.bf16.msra.mxu0 %v735
        %745 = vmatmul.bf16.gmra.mxu0 %v732
        %v746 = vpop.f32.mrf.mxu0
        %v747 = vadd.f32 0.0, %v746
        %v748 = vpop.f32.mrf.mxu0
        %749 = vdwg.mxu0
        %v750 = vpack.c.bf16 %v747, %v747
        %752 = vrot.lane.b32.xlu0 %v750, 24
        %v753 = vpop.permute.xlu0 %752
        %vm755 = vcmask 257216
        %756 = vst.msk [vmem:[#allocation3] sm:$0xf] %vm755, %v753
        %v757 = vld [vmem:[#allocation3] sm:$0xf]
        %v758 = vld [vmem:[#allocation10] sm:$0xf]
        %v759 = vld [vmem:[#allocation10 + $0x4] sm:$0xf]
        %v760 = vld [vmem:[#allocation10 + $0x8] sm:$0xf]
        %v761 = vld [vmem:[#allocation10 + $0xc] sm:$0xf]
        %v762 = vld [vmem:[%s6] sm:$0x1]
        %v763 = vunpack.c.l.bf16 %v762
        %v764 = vperm.slane %v763, 0
        %v769 = vunpack.c.l.b16 %v758
        %v770 = vunpack.c.l.b16 %v759
        %v771 = vunpack.c.l.b16 %v760
        %v772 = vunpack.c.l.b16 %v761
        %v773 = vpack.c.b16 %v770, %v769
        %v774 = vpack.c.b16 %v772, %v771
        %v778 = vsel %vm458, %v757, 0
        %780 = vmatpush.bf16.msra.mxu0 0
        %781 = vmatpush.bf16.msra.mxu0 0
        %782 = vmatpush.bf16.msra.mxu0 0
        %783 = vmatpush.bf16.msra.mxu0 0
        %784 = vmatpush.bf16.msra.mxu0 0
        %785 = vmatpush.bf16.msra.mxu0 0
        %786 = vmatpush.bf16.msra.mxu0 %v774
        %787 = vmatpush.bf16.msra.mxu0 %v773
        %788 = vmatmul.bf16.gmra.mxu0 %v778
        %v789 = vpop.f32.mrf.mxu0
        %v790 = vadd.f32 %v764, %v789
        %v791 = vpop.f32.mrf.mxu0
        %792 = vdwg.mxu0
        %793 = vst.msk [vmem:[%s359] sm:$0xff] %vm458, %v790
        %s794 = sand.u32 %s200, 1
        %s795 = scalar_lea.sflag [#allocation6], %s794
        %s796 = sand.u32 %s200, 1
        %s797 = smul.addr %s796, 8
        %s798 = scalar_lea.vmem [#allocation12], %s797
        // Predicated region
        $region69: #{tpu_custom_call.1} parent=47 // pred_check
          %p799 = pneg %p210
        $region70: #{tpu_custom_call.1} parent=47 // pred_check_branch
          %801 = sbr.rel (%p799) target = $region72
        $region71: #{tpu_custom_call.1} parent=47 // pred_region
          %803 = vsyncadd %s795, 0
          %s804 = sadd.s32 %s31, %s30
          %s805 = smul.addr %s804, 8
          %s806 = scalar_lea.hbm %s7, %s805
          %s808 = sshll.u32 %s798, 4
          %s809 = int_to_ptr.vmem [resolvable:$true] %s808
          %s810 = sshll.u32 %s806, 4
          %s811 = int_to_ptr.hbm [resolvable:$true] %s810
          %813 = dma.vmem_to_hbm [thread:$0]  %s809, 128, %s811, %s795
        $region72: #{tpu_custom_call.1} parent=47 // pred_fallthru
          _
      $region48: #{tpu_custom_call.1} parent=5 // pred_fallthru
        _
      %p814 = scmp.le.s32.totalorder 2, %s21
      // Predicated region
      $region73: #{tpu_custom_call.1} parent=5 // pred_check
        %p815 = pneg %p814
      $region74: #{tpu_custom_call.1} parent=5 // pred_check_branch
        %817 = sbr.rel (%p815) target = $region76
      $region75: #{tpu_custom_call.1} parent=5 // pred_region
        %s818 = ssub.s32 %s21, 2
        // Predicated region
        $region77: #{tpu_custom_call.1} parent=75 // pred_check
          %p819 = pneg %p216
        $region78: #{tpu_custom_call.1} parent=75 // pred_check_branch
          %821 = sbr.rel (%p819) target = $region80
        $region79: #{tpu_custom_call.1} parent=75 // pred_region
          %s822 = sand.u32 %s201, 1
          %s823 = scalar_lea.sflag [#allocation6], %s822
          %s824 = sand.u32 %s201, 1
          %s825 = smul.addr %s824, 8
          %s826 = scalar_lea.vmem [#allocation12], %s825
          %828 = dma.done %s823, 128
        $region80: #{tpu_custom_call.1} parent=75 // pred_fallthru
          _
      $region76: #{tpu_custom_call.1} parent=5 // pred_fallthru
        _
    $region6: #{tpu_custom_call.1} parent=1 // loop_footer
      %s25 = sadd.s32 1, %s21
    $region7: #{tpu_custom_call.1} parent=1 // loop_footer_branch
      %20 = sbr.rel target = $region3
    $region8: #{tpu_custom_call.1} parent=1 // loop_exit
      _
    %829 = vsyncpa [#allocation5], 1
    %s830 = scalar_lea.sflag [#allocation5], 1
    %831 = vsyncpa %s830, 1
    %832 = vsyncpa [#allocation8], 1
    %833 = vsyncpa [#allocation11], 1
    %834 = vsyncpa [#allocation6], 1
    %s835 = scalar_lea.sflag [#allocation6], 1
    %836 = vsyncpa %s835, 1

</llo_original>
